<compile_context>
chip_gen: v7x
topology: tpu7x:2x2x1
jax: 0.10.0
libtpu: 0.0.40
codegen_flags: <defaults>
</compile_context>

<pallas_src>
import functools

import jax
import jax.numpy as jnp
import numpy as np
from jax.experimental import pallas as pl
from jax.experimental.pallas import tpu as pltpu


def _tap_masks(D, H, W):
    """(27, D*H*W) float32 {0,1} masks: row t == validity of conv tap t (exact zero padding)."""
    d = np.arange(D)[:, None, None]
    h = np.arange(H)[None, :, None]
    w = np.arange(W)[None, None, :]
    rows = []
    for kd in range(3):
        for kh in range(3):
            for kw in range(3):
                dd, dh, dw = kd - 1, kh - 1, kw - 1
                valid = ((d + dd >= 0) & (d + dd < D) &
                         (h + dh >= 0) & (h + dh < H) &
                         (w + dw >= 0) & (w + dw < W))
                rows.append(valid.reshape(-1))
    return np.stack(rows, axis=0).astype(np.float32)


def _pick_batch_block(N, per_elem_bytes, budget_bytes, cap=16):
    """Largest divisor B of N with B <= cap, per-step footprint <= budget, grid length >= 2."""
    max_b = max(1, budget_bytes // per_elem_bytes)
    best = 1
    for b in range(1, N + 1):
        if N % b:
            continue
        if b > max_b or b > cap:
            break
        if N >= 2 and N // b < 2:      # keep >= 2 grid steps so both v7x TCs get work
            break
        best = b
    return best


def _dense_unit_kernel(x_ref, scale_ref, shift_ref, mask_ref, w_ref, b_ref,
                       o_ref, patch_ref, *, B, C, D, H, W, CP, TAPS_PER_SLAB):
    """One block of B batch elements per grid step.

    x_ref     : (B, C, F)   input, spatial flattened onto lanes (F = D*H*W), f32
    scale_ref : (C, 1)      folded BN scale, f32
    shift_ref : (C, 1)      folded BN shift, f32
    mask_ref  : (27, F)     0/1 border masks (exact conv zero padding), f32
    w_ref     : (K, CP)     conv weights, tap-major/channel-minor, zero-padded to CP, bf16
    b_ref     : (K, 1)      conv bias, f32
    o_ref     : (B, K, F)   output (lane-dense), f32
    patch_ref : (CP, B*F)   VMEM scratch im2col patch matrix, bf16
    """
    F = D * H * W
    scale = scale_ref[...]                              # (C, 1) broadcasts over lanes
    shift = shift_ref[...]
    zeros_tap = jnp.zeros((C, F), jnp.float32)          # pad rows folded into last slab
    slab_rows = TAPS_PER_SLAB * C
    n_slabs = CP // slab_rows

    for b in range(B):                                  # static unroll; B is small
        x = x_ref[b].astype(jnp.float32)                # (C, F)

        # Fused BatchNorm3d (eval-mode fold) + ELU(alpha=1), dense over the lane axis.
        a = x * scale + shift
        a = jnp.where(a > 0, a, jnp.exp(a) - 1.0)

        col = b * F
        t = 0
        for s in range(n_slabs):
            pieces = []
            for _ in range(TAPS_PER_SLAB):
                if t < 27:
                    kd, kh, kw = t // 9, (t // 3) % 3, t % 3
                    off = (kd - 1) * H * W + (kh - 1) * W + (kw - 1)
                    if off == 0:
                        tap = a                          # center tap: no shift, mask == 1
                    else:
                        shifted = pltpu.roll(a, shift=(-off) % F, axis=1)  # tap[f] = a[f+off]
                        tap = shifted * mask_ref[pl.ds(t, 1), :]           # exact zero padding
                    pieces.append(tap)
                else:
                    pieces.append(zeros_tap)             # zero contraction-pad rows (aligned)
                t += 1
            slab = pieces[0] if len(pieces) == 1 else jnp.concatenate(pieces, axis=0)
            # Full-width, tile-aligned bf16 store (rows multiple of 16, cols multiple of 128).
            patch_ref[pl.ds(s * slab_rows, slab_rows), pl.ds(col, F)] = (
                slab.astype(patch_ref.dtype))

    # Single bf16 MXU matmul for the whole block: (K, CP) x (CP, B*F) -> (K, B*F), f32 acc.
    acc = jnp.dot(w_ref[...], patch_ref[...], preferred_element_type=jnp.float32)
    bias = b_ref[...]                                    # (K, 1)
    for b in range(B):
        o_ref[b] = (acc[:, b * F:(b + 1) * F] + bias).astype(o_ref.dtype)


def dense_unit_forward(x, params, eps=1e-5, vmem_budget_bytes=24 << 20):
    """x: (N, C, D, H, W) float32 (PyTorch NCDHW). Returns (N, k_factor, D, H, W) float32."""
    gamma, beta, running_mean, running_var, conv_w, conv_b = params
    N, C, D, H, W = x.shape
    K, Cw, k0, k1, k2 = conv_w.shape
    assert Cw == C and k0 == k1 == k2 == 3, "kernel implements k_size=3, padding=1"
    F = D * H * W

    # bf16 patch scratch -> packed sublane tile is 16 rows: group taps so every patch store is
    # a full aligned (16, F) slab.  Fallback to per-tap stores if C doesn't divide 16.
    taps_per_slab = 16 // C if 16 % C == 0 else 1
    n_tap_slots = ((27 + taps_per_slab - 1) // taps_per_slab) * taps_per_slab
    CP = n_tap_slots * C                                 # e.g. C=4 -> 112 (vs old 128)

    # Fold BatchNorm3d (inference semantics) into per-channel scale & shift.
    scale = (gamma / jnp.sqrt(running_var + eps)).astype(jnp.float32)   # (C,)
    shift = (beta - running_mean * scale).astype(jnp.float32)           # (C,)

    # Free reshape: NCDHW -> (N, C, F); long spatial axis is minor (lane-dense).
    x2d = x.reshape(N, C, F).astype(jnp.float32)

    # Conv weights (K, C, 3, 3, 3) -> (K, 27*C) tap-major/channel-minor, zero-pad to CP, bf16.
    w_flat = jnp.transpose(conv_w, (0, 2, 3, 4, 1)).reshape(K, 27 * C).astype(jnp.float32)
    w_flat = jnp.pad(w_flat, ((0, 0), (0, CP - 27 * C))).astype(jnp.bfloat16)

    masks = jnp.asarray(_tap_masks(D, H, W))             # (27, F) constant

    # Batch blocking: amortize per-step pipeline overhead; keep the grid >= 2 and the
    # per-step footprint (double-buffered in/out + single patch scratch) under budget.
    per_elem = 2 * C * F * 4 + 2 * K * F * 4 + CP * F * 2
    B = _pick_batch_block(N, per_elem, vmem_budget_bytes)
    grid_n = N // B

    kernel = functools.partial(_dense_unit_kernel, B=B, C=C, D=D, H=H, W=W,
                               CP=CP, TAPS_PER_SLAB=taps_per_slab)
    out = pl.pallas_call(
        kernel,
        out_shape=jax.ShapeDtypeStruct((N, K, F), jnp.float32),
        grid=(grid_n,),
        in_specs=[
            pl.BlockSpec((B, C, F), lambda n: (n, 0, 0)),
            pl.BlockSpec((C, 1), lambda n: (0, 0)),
            pl.BlockSpec((C, 1), lambda n: (0, 0)),
            pl.BlockSpec((27, F), lambda n: (0, 0)),
            pl.BlockSpec((K, CP), lambda n: (0, 0)),
            pl.BlockSpec((K, 1), lambda n: (0, 0)),
        ],
        out_specs=pl.BlockSpec((B, K, F), lambda n: (n, 0, 0)),
        scratch_shapes=[pltpu.VMEM((CP, B * F), jnp.bfloat16)],
        compiler_params=pltpu.CompilerParams(
            dimension_semantics=("parallel",),
            vmem_limit_bytes=48 << 20),   # raise past v5e's 16 MiB scoped default
    )(x2d, scale.reshape(C, 1), shift.reshape(C, 1), masks, w_flat,
      conv_b.reshape(K, 1).astype(jnp.float32))

    # Free reshape back to PyTorch NCDHW channel convention.
    return out.reshape(N, K, D, H, W)


def _reference(x, gamma, beta, running_mean, running_var, conv_w, conv_b, eps=1e-5):
    """Pure-JAX f32 reference (eval-mode BN + ELU + Conv3d pad=1), NCDHW."""
    rshape = (1, -1, 1, 1, 1)
    xn = (x - running_mean.reshape(rshape)) / jnp.sqrt(running_var.reshape(rshape) + eps)
    xn = xn * gamma.reshape(rshape) + beta.reshape(rshape)
    a = jnp.where(xn > 0, xn, jnp.exp(xn) - 1.0)
    out = jax.lax.conv_general_dilated(
        a, conv_w, window_strides=(1, 1, 1),
        padding=((1, 1), (1, 1), (1, 1)),
        dimension_numbers=("NCDHW", "OIDHW", "NCDHW"),
        precision=jax.lax.Precision.HIGHEST)
    return out + conv_b.reshape(rshape)


if __name__ == "__main__":
    key = jax.random.PRNGKey(0)
    ks = jax.random.split(key, 8)

    # DenseUnit(in_c=4, k_factor=12, k_size=3)
    in_c, k_factor, k_size = 4, 12, 3
    D = H = W = 8

    gamma = 1.0 + 0.1 * jax.random.normal(ks[0], (in_c,), jnp.float32)
    beta = 0.1 * jax.random.normal(ks[1], (in_c,), jnp.float32)
    running_mean = 0.1 * jax.random.normal(ks[2], (in_c,), jnp.float32)
    running_var = 1.0 + 0.1 * jnp.abs(jax.random.normal(ks[3], (in_c,), jnp.float32))
    conv_w = 0.1 * jax.random.normal(ks[4], (k_factor, in_c, k_size, k_size, k_size),
                                     jnp.float32)
    conv_b = 0.05 * jax.random.normal(ks[5], (k_factor,), jnp.float32)
    params = (gamma, beta, running_mean, running_var, conv_w, conv_b)

    # bf16 MXU operands (f32 accumulate) -> compare against the f32 reference at bf16 tolerance.
    TOL = dict(atol=2e-2, rtol=2e-2)

    # Case 1: N=2 -> B=1, grid=(2,) (both TensorCores busy on v7x).
    x = jax.random.normal(ks[6], (2, in_c, D, H, W), jnp.float32)
    out = jax.block_until_ready(dense_unit_forward(x, params))
    assert out.shape == (2, k_factor, D, H, W), out.shape
    np.testing.assert_allclose(np.asarray(out), np.asarray(_reference(x, *params)), **TOL)

    # Case 2: N=8 -> B=4, grid=(2,) (exercises the batch-blocking path).
    x8 = jax.random.normal(ks[7], (8, in_c, D, H, W), jnp.float32)
    out8 = jax.block_until_ready(dense_unit_forward(x8, params))
    assert out8.shape == (8, k_factor, D, H, W), out8.shape
    np.testing.assert_allclose(np.asarray(out8), np.asarray(_reference(x8, *params)), **TOL)

    print("KERNEL_OK")
</pallas_src>

<mosaic_0001>
module attributes {stable_mosaic.version = 11 : i64} {
  func.func @_dense_unit_kernel(%arg0: i32, %arg1: memref<1x4x512xf32, #tpu.memory_space<vmem>>, %arg2: memref<4x1xf32, #tpu.memory_space<vmem>>, %arg3: memref<4x1xf32, #tpu.memory_space<vmem>>, %arg4: memref<27x512xf32, #tpu.memory_space<vmem>>, %arg5: memref<12x112xbf16, #tpu.memory_space<vmem>>, %arg6: memref<12x1xf32, #tpu.memory_space<vmem>>, %arg7: memref<1x12x512xf32, #tpu.memory_space<vmem>>, %arg8: memref<112x512xbf16, #tpu.memory_space<vmem>>) attributes {dimension_semantics = [#tpu.dimension_semantics<parallel>], iteration_bounds = array<i64: 2>, scalar_prefetch = 0 : i64, scratch_operands = 1 : i64, tpu.core_type = #tpu.core_type<tc>, window_params = [{transform_indices = @transform_0, window_bounds = array<i64: 1, 4, 512>}, {pipeline_mode = #tpu.pipeline_mode<synchronous>, transform_indices = @transform_1, window_bounds = array<i64: 4, 1>}, {pipeline_mode = #tpu.pipeline_mode<synchronous>, transform_indices = @transform_2, window_bounds = array<i64: 4, 1>}, {pipeline_mode = #tpu.pipeline_mode<synchronous>, transform_indices = @transform_3, window_bounds = array<i64: 27, 512>}, {pipeline_mode = #tpu.pipeline_mode<synchronous>, transform_indices = @transform_4, window_bounds = array<i64: 12, 112>}, {pipeline_mode = #tpu.pipeline_mode<synchronous>, transform_indices = @transform_5, window_bounds = array<i64: 12, 1>}, {transform_indices = @transform_6, window_bounds = array<i64: 1, 12, 512>}]} {
    %c0 = arith.constant 0 : index
    %c0_0 = arith.constant 0 : index
    %0 = vector.load %arg2[%c0, %c0_0] : memref<4x1xf32, #tpu.memory_space<vmem>>, vector<4x1xf32>
    %c0_1 = arith.constant 0 : index
    %c0_2 = arith.constant 0 : index
    %1 = vector.load %arg3[%c0_1, %c0_2] : memref<4x1xf32, #tpu.memory_space<vmem>>, vector<4x1xf32>
    %cst = arith.constant 0.000000e+00 : f32
    %2 = vector.broadcast %cst : f32 to vector<4x512xf32>
    %c0_3 = arith.constant 0 : index
    %c0_4 = arith.constant 0 : index
    %c0_5 = arith.constant 0 : index
    %3 = vector.load %arg1[%c0_3, %c0_4, %c0_5] : memref<1x4x512xf32, #tpu.memory_space<vmem>>, vector<1x4x512xf32>
    %4 = vector.shape_cast %3 : vector<1x4x512xf32> to vector<4x512xf32>
    %5 = vector.broadcast %0 : vector<4x1xf32> to vector<4x512xf32>
    %6 = arith.mulf %4, %5 : vector<4x512xf32>
    %7 = vector.broadcast %1 : vector<4x1xf32> to vector<4x512xf32>
    %8 = arith.addf %6, %7 : vector<4x512xf32>
    %cst_6 = arith.constant 0.000000e+00 : f32
    %9 = vector.broadcast %cst_6 : f32 to vector<4x512xf32>
    %10 = arith.cmpf ogt, %8, %9 : vector<4x512xf32>
    %11 = math.exp %8 : vector<4x512xf32>
    %cst_7 = arith.constant 1.000000e+00 : f32
    %12 = vector.broadcast %cst_7 : f32 to vector<4x512xf32>
    %13 = arith.subf %11, %12 : vector<4x512xf32>
    %14 = arith.select %10, %8, %13 : vector<4x512xi1>, vector<4x512xf32>
    %c73_i32 = arith.constant 73 : i32
    %15 = tpu.dynamic_rotate %14 by %c73_i32 dim 1 : vector<4x512xf32>, i32 -> vector<4x512xf32>
    %c0_8 = arith.constant 0 : index
    %c0_9 = arith.constant 0 : index
    %16 = vector.load %arg4[%c0_8, %c0_9] : memref<27x512xf32, #tpu.memory_space<vmem>>, vector<1x512xf32>
    %17 = vector.broadcast %16 : vector<1x512xf32> to vector<4x512xf32>
    %18 = arith.mulf %15, %17 : vector<4x512xf32>
    %c72_i32 = arith.constant 72 : i32
    %19 = tpu.dynamic_rotate %14 by %c72_i32 dim 1 : vector<4x512xf32>, i32 -> vector<4x512xf32>
    %c1 = arith.constant 1 : index
    %c0_10 = arith.constant 0 : index
    %20 = vector.load %arg4[%c1, %c0_10] : memref<27x512xf32, #tpu.memory_space<vmem>>, vector<1x512xf32>
    %21 = vector.broadcast %20 : vector<1x512xf32> to vector<4x512xf32>
    %22 = arith.mulf %19, %21 : vector<4x512xf32>
    %c71_i32 = arith.constant 71 : i32
    %23 = tpu.dynamic_rotate %14 by %c71_i32 dim 1 : vector<4x512xf32>, i32 -> vector<4x512xf32>
    %c2 = arith.constant 2 : index
    %c0_11 = arith.constant 0 : index
    %24 = vector.load %arg4[%c2, %c0_11] : memref<27x512xf32, #tpu.memory_space<vmem>>, vector<1x512xf32>
    %25 = vector.broadcast %24 : vector<1x512xf32> to vector<4x512xf32>
    %26 = arith.mulf %23, %25 : vector<4x512xf32>
    %c65_i32 = arith.constant 65 : i32
    %27 = tpu.dynamic_rotate %14 by %c65_i32 dim 1 : vector<4x512xf32>, i32 -> vector<4x512xf32>
    %c3 = arith.constant 3 : index
    %c0_12 = arith.constant 0 : index
    %28 = vector.load %arg4[%c3, %c0_12] : memref<27x512xf32, #tpu.memory_space<vmem>>, vector<1x512xf32>
    %29 = vector.broadcast %28 : vector<1x512xf32> to vector<4x512xf32>
    %30 = arith.mulf %27, %29 : vector<4x512xf32>
    %31 = tpu.concatenate %18, %22, %26, %30 in 0 : vector<4x512xf32>, vector<4x512xf32>, vector<4x512xf32>, vector<4x512xf32> -> vector<16x512xf32>
    %32 = arith.truncf %31 : vector<16x512xf32> to vector<16x512xbf16>
    %c0_13 = arith.constant 0 : index
    %c0_14 = arith.constant 0 : index
    %33 = vector.load %arg8[%c0_13, %c0_14] : memref<112x512xbf16, #tpu.memory_space<vmem>>, vector<16x512xbf16>
    tpu.vector_store %arg8[%c0_13, %c0_14], %32 {strides = array<i32>} : memref<112x512xbf16, #tpu.memory_space<vmem>>, vector<16x512xbf16>,
    %c64_i32 = arith.constant 64 : i32
    %34 = tpu.dynamic_rotate %14 by %c64_i32 dim 1 : vector<4x512xf32>, i32 -> vector<4x512xf32>
    %c4 = arith.constant 4 : index
    %c0_15 = arith.constant 0 : index
    %35 = vector.load %arg4[%c4, %c0_15] : memref<27x512xf32, #tpu.memory_space<vmem>>, vector<1x512xf32>
    %36 = vector.broadcast %35 : vector<1x512xf32> to vector<4x512xf32>
    %37 = arith.mulf %34, %36 : vector<4x512xf32>
    %c63_i32 = arith.constant 63 : i32
    %38 = tpu.dynamic_rotate %14 by %c63_i32 dim 1 : vector<4x512xf32>, i32 -> vector<4x512xf32>
    %c5 = arith.constant 5 : index
    %c0_16 = arith.constant 0 : index
    %39 = vector.load %arg4[%c5, %c0_16] : memref<27x512xf32, #tpu.memory_space<vmem>>, vector<1x512xf32>
    %40 = vector.broadcast %39 : vector<1x512xf32> to vector<4x512xf32>
    %41 = arith.mulf %38, %40 : vector<4x512xf32>
    %c57_i32 = arith.constant 57 : i32
    %42 = tpu.dynamic_rotate %14 by %c57_i32 dim 1 : vector<4x512xf32>, i32 -> vector<4x512xf32>
    %c6 = arith.constant 6 : index
    %c0_17 = arith.constant 0 : index
    %43 = vector.load %arg4[%c6, %c0_17] : memref<27x512xf32, #tpu.memory_space<vmem>>, vector<1x512xf32>
    %44 = vector.broadcast %43 : vector<1x512xf32> to vector<4x512xf32>
    %45 = arith.mulf %42, %44 : vector<4x512xf32>
    %c56_i32 = arith.constant 56 : i32
    %46 = tpu.dynamic_rotate %14 by %c56_i32 dim 1 : vector<4x512xf32>, i32 -> vector<4x512xf32>
    %c7 = arith.constant 7 : index
    %c0_18 = arith.constant 0 : index
    %47 = vector.load %arg4[%c7, %c0_18] : memref<27x512xf32, #tpu.memory_space<vmem>>, vector<1x512xf32>
    %48 = vector.broadcast %47 : vector<1x512xf32> to vector<4x512xf32>
    %49 = arith.mulf %46, %48 : vector<4x512xf32>
    %50 = tpu.concatenate %37, %41, %45, %49 in 0 : vector<4x512xf32>, vector<4x512xf32>, vector<4x512xf32>, vector<4x512xf32> -> vector<16x512xf32>
    %51 = arith.truncf %50 : vector<16x512xf32> to vector<16x512xbf16>
    %c16 = arith.constant 16 : index
    %c0_19 = arith.constant 0 : index
    %52 = vector.load %arg8[%c16, %c0_19] : memref<112x512xbf16, #tpu.memory_space<vmem>>, vector<16x512xbf16>
    tpu.vector_store %arg8[%c16, %c0_19], %51 {strides = array<i32>} : memref<112x512xbf16, #tpu.memory_space<vmem>>, vector<16x512xbf16>,
    %c55_i32 = arith.constant 55 : i32
    %53 = tpu.dynamic_rotate %14 by %c55_i32 dim 1 : vector<4x512xf32>, i32 -> vector<4x512xf32>
    %c8 = arith.constant 8 : index
    %c0_20 = arith.constant 0 : index
    %54 = vector.load %arg4[%c8, %c0_20] : memref<27x512xf32, #tpu.memory_space<vmem>>, vector<1x512xf32>
    %55 = vector.broadcast %54 : vector<1x512xf32> to vector<4x512xf32>
    %56 = arith.mulf %53, %55 : vector<4x512xf32>
    %c9_i32 = arith.constant 9 : i32
    %57 = tpu.dynamic_rotate %14 by %c9_i32 dim 1 : vector<4x512xf32>, i32 -> vector<4x512xf32>
    %c9 = arith.constant 9 : index
    %c0_21 = arith.constant 0 : index
    %58 = vector.load %arg4[%c9, %c0_21] : memref<27x512xf32, #tpu.memory_space<vmem>>, vector<1x512xf32>
    %59 = vector.broadcast %58 : vector<1x512xf32> to vector<4x512xf32>
    %60 = arith.mulf %57, %59 : vector<4x512xf32>
    %c8_i32 = arith.constant 8 : i32
    %61 = tpu.dynamic_rotate %14 by %c8_i32 dim 1 : vector<4x512xf32>, i32 -> vector<4x512xf32>
    %c10 = arith.constant 10 : index
    %c0_22 = arith.constant 0 : index
    %62 = vector.load %arg4[%c10, %c0_22] : memref<27x512xf32, #tpu.memory_space<vmem>>, vector<1x512xf32>
    %63 = vector.broadcast %62 : vector<1x512xf32> to vector<4x512xf32>
    %64 = arith.mulf %61, %63 : vector<4x512xf32>
    %c7_i32 = arith.constant 7 : i32
    %65 = tpu.dynamic_rotate %14 by %c7_i32 dim 1 : vector<4x512xf32>, i32 -> vector<4x512xf32>
    %c11 = arith.constant 11 : index
    %c0_23 = arith.constant 0 : index
    %66 = vector.load %arg4[%c11, %c0_23] : memref<27x512xf32, #tpu.memory_space<vmem>>, vector<1x512xf32>
    %67 = vector.broadcast %66 : vector<1x512xf32> to vector<4x512xf32>
    %68 = arith.mulf %65, %67 : vector<4x512xf32>
    %69 = tpu.concatenate %56, %60, %64, %68 in 0 : vector<4x512xf32>, vector<4x512xf32>, vector<4x512xf32>, vector<4x512xf32> -> vector<16x512xf32>
    %70 = arith.truncf %69 : vector<16x512xf32> to vector<16x512xbf16>
    %c32 = arith.constant 32 : index
    %c0_24 = arith.constant 0 : index
    %71 = vector.load %arg8[%c32, %c0_24] : memref<112x512xbf16, #tpu.memory_space<vmem>>, vector<16x512xbf16>
    tpu.vector_store %arg8[%c32, %c0_24], %70 {strides = array<i32>} : memref<112x512xbf16, #tpu.memory_space<vmem>>, vector<16x512xbf16>,
    %c1_i32 = arith.constant 1 : i32
    %72 = tpu.dynamic_rotate %14 by %c1_i32 dim 1 : vector<4x512xf32>, i32 -> vector<4x512xf32>
    %c12 = arith.constant 12 : index
    %c0_25 = arith.constant 0 : index
    %73 = vector.load %arg4[%c12, %c0_25] : memref<27x512xf32, #tpu.memory_space<vmem>>, vector<1x512xf32>
    %74 = vector.broadcast %73 : vector<1x512xf32> to vector<4x512xf32>
    %75 = arith.mulf %72, %74 : vector<4x512xf32>
    %c511_i32 = arith.constant 511 : i32
    %76 = tpu.dynamic_rotate %14 by %c511_i32 dim 1 : vector<4x512xf32>, i32 -> vector<4x512xf32>
    %c14 = arith.constant 14 : index
    %c0_26 = arith.constant 0 : index
    %77 = vector.load %arg4[%c14, %c0_26] : memref<27x512xf32, #tpu.memory_space<vmem>>, vector<1x512xf32>
    %78 = vector.broadcast %77 : vector<1x512xf32> to vector<4x512xf32>
    %79 = arith.mulf %76, %78 : vector<4x512xf32>
    %c505_i32 = arith.constant 505 : i32
    %80 = tpu.dynamic_rotate %14 by %c505_i32 dim 1 : vector<4x512xf32>, i32 -> vector<4x512xf32>
    %c15 = arith.constant 15 : index
    %c0_27 = arith.constant 0 : index
    %81 = vector.load %arg4[%c15, %c0_27] : memref<27x512xf32, #tpu.memory_space<vmem>>, vector<1x512xf32>
    %82 = vector.broadcast %81 : vector<1x512xf32> to vector<4x512xf32>
    %83 = arith.mulf %80, %82 : vector<4x512xf32>
    %84 = tpu.concatenate %75, %14, %79, %83 in 0 : vector<4x512xf32>, vector<4x512xf32>, vector<4x512xf32>, vector<4x512xf32> -> vector<16x512xf32>
    %85 = arith.truncf %84 : vector<16x512xf32> to vector<16x512xbf16>
    %c48 = arith.constant 48 : index
    %c0_28 = arith.constant 0 : index
    %86 = vector.load %arg8[%c48, %c0_28] : memref<112x512xbf16, #tpu.memory_space<vmem>>, vector<16x512xbf16>
    tpu.vector_store %arg8[%c48, %c0_28], %85 {strides = array<i32>} : memref<112x512xbf16, #tpu.memory_space<vmem>>, vector<16x512xbf16>,
    %c504_i32 = arith.constant 504 : i32
    %87 = tpu.dynamic_rotate %14 by %c504_i32 dim 1 : vector<4x512xf32>, i32 -> vector<4x512xf32>
    %c16_29 = arith.constant 16 : index
    %c0_30 = arith.constant 0 : index
    %88 = vector.load %arg4[%c16_29, %c0_30] : memref<27x512xf32, #tpu.memory_space<vmem>>, vector<1x512xf32>
    %89 = vector.broadcast %88 : vector<1x512xf32> to vector<4x512xf32>
    %90 = arith.mulf %87, %89 : vector<4x512xf32>
    %c503_i32 = arith.constant 503 : i32
    %91 = tpu.dynamic_rotate %14 by %c503_i32 dim 1 : vector<4x512xf32>, i32 -> vector<4x512xf32>
    %c17 = arith.constant 17 : index
    %c0_31 = arith.constant 0 : index
    %92 = vector.load %arg4[%c17, %c0_31] : memref<27x512xf32, #tpu.memory_space<vmem>>, vector<1x512xf32>
    %93 = vector.broadcast %92 : vector<1x512xf32> to vector<4x512xf32>
    %94 = arith.mulf %91, %93 : vector<4x512xf32>
    %c457_i32 = arith.constant 457 : i32
    %95 = tpu.dynamic_rotate %14 by %c457_i32 dim 1 : vector<4x512xf32>, i32 -> vector<4x512xf32>
    %c18 = arith.constant 18 : index
    %c0_32 = arith.constant 0 : index
    %96 = vector.load %arg4[%c18, %c0_32] : memref<27x512xf32, #tpu.memory_space<vmem>>, vector<1x512xf32>
    %97 = vector.broadcast %96 : vector<1x512xf32> to vector<4x512xf32>
    %98 = arith.mulf %95, %97 : vector<4x512xf32>
    %c456_i32 = arith.constant 456 : i32
    %99 = tpu.dynamic_rotate %14 by %c456_i32 dim 1 : vector<4x512xf32>, i32 -> vector<4x512xf32>
    %c19 = arith.constant 19 : index
    %c0_33 = arith.constant 0 : index
    %100 = vector.load %arg4[%c19, %c0_33] : memref<27x512xf32, #tpu.memory_space<vmem>>, vector<1x512xf32>
    %101 = vector.broadcast %100 : vector<1x512xf32> to vector<4x512xf32>
    %102 = arith.mulf %99, %101 : vector<4x512xf32>
    %103 = tpu.concatenate %90, %94, %98, %102 in 0 : vector<4x512xf32>, vector<4x512xf32>, vector<4x512xf32>, vector<4x512xf32> -> vector<16x512xf32>
    %104 = arith.truncf %103 : vector<16x512xf32> to vector<16x512xbf16>
    %c64 = arith.constant 64 : index
    %c0_34 = arith.constant 0 : index
    %105 = vector.load %arg8[%c64, %c0_34] : memref<112x512xbf16, #tpu.memory_space<vmem>>, vector<16x512xbf16>
    tpu.vector_store %arg8[%c64, %c0_34], %104 {strides = array<i32>} : memref<112x512xbf16, #tpu.memory_space<vmem>>, vector<16x512xbf16>,
    %c455_i32 = arith.constant 455 : i32
    %106 = tpu.dynamic_rotate %14 by %c455_i32 dim 1 : vector<4x512xf32>, i32 -> vector<4x512xf32>
    %c20 = arith.constant 20 : index
    %c0_35 = arith.constant 0 : index
    %107 = vector.load %arg4[%c20, %c0_35] : memref<27x512xf32, #tpu.memory_space<vmem>>, vector<1x512xf32>
    %108 = vector.broadcast %107 : vector<1x512xf32> to vector<4x512xf32>
    %109 = arith.mulf %106, %108 : vector<4x512xf32>
    %c449_i32 = arith.constant 449 : i32
    %110 = tpu.dynamic_rotate %14 by %c449_i32 dim 1 : vector<4x512xf32>, i32 -> vector<4x512xf32>
    %c21 = arith.constant 21 : index
    %c0_36 = arith.constant 0 : index
    %111 = vector.load %arg4[%c21, %c0_36] : memref<27x512xf32, #tpu.memory_space<vmem>>, vector<1x512xf32>
    %112 = vector.broadcast %111 : vector<1x512xf32> to vector<4x512xf32>
    %113 = arith.mulf %110, %112 : vector<4x512xf32>
    %c448_i32 = arith.constant 448 : i32
    %114 = tpu.dynamic_rotate %14 by %c448_i32 dim 1 : vector<4x512xf32>, i32 -> vector<4x512xf32>
    %c22 = arith.constant 22 : index
    %c0_37 = arith.constant 0 : index
    %115 = vector.load %arg4[%c22, %c0_37] : memref<27x512xf32, #tpu.memory_space<vmem>>, vector<1x512xf32>
    %116 = vector.broadcast %115 : vector<1x512xf32> to vector<4x512xf32>
    %117 = arith.mulf %114, %116 : vector<4x512xf32>
    %c447_i32 = arith.constant 447 : i32
    %118 = tpu.dynamic_rotate %14 by %c447_i32 dim 1 : vector<4x512xf32>, i32 -> vector<4x512xf32>
    %c23 = arith.constant 23 : index
    %c0_38 = arith.constant 0 : index
    %119 = vector.load %arg4[%c23, %c0_38] : memref<27x512xf32, #tpu.memory_space<vmem>>, vector<1x512xf32>
    %120 = vector.broadcast %119 : vector<1x512xf32> to vector<4x512xf32>
    %121 = arith.mulf %118, %120 : vector<4x512xf32>
    %122 = tpu.concatenate %109, %113, %117, %121 in 0 : vector<4x512xf32>, vector<4x512xf32>, vector<4x512xf32>, vector<4x512xf32> -> vector<16x512xf32>
    %123 = arith.truncf %122 : vector<16x512xf32> to vector<16x512xbf16>
    %c80 = arith.constant 80 : index
    %c0_39 = arith.constant 0 : index
    %124 = vector.load %arg8[%c80, %c0_39] : memref<112x512xbf16, #tpu.memory_space<vmem>>, vector<16x512xbf16>
    tpu.vector_store %arg8[%c80, %c0_39], %123 {strides = array<i32>} : memref<112x512xbf16, #tpu.memory_space<vmem>>, vector<16x512xbf16>,
    %c441_i32 = arith.constant 441 : i32
    %125 = tpu.dynamic_rotate %14 by %c441_i32 dim 1 : vector<4x512xf32>, i32 -> vector<4x512xf32>
    %c24 = arith.constant 24 : index
    %c0_40 = arith.constant 0 : index
    %126 = vector.load %arg4[%c24, %c0_40] : memref<27x512xf32, #tpu.memory_space<vmem>>, vector<1x512xf32>
    %127 = vector.broadcast %126 : vector<1x512xf32> to vector<4x512xf32>
    %128 = arith.mulf %125, %127 : vector<4x512xf32>
    %c440_i32 = arith.constant 440 : i32
    %129 = tpu.dynamic_rotate %14 by %c440_i32 dim 1 : vector<4x512xf32>, i32 -> vector<4x512xf32>
    %c25 = arith.constant 25 : index
    %c0_41 = arith.constant 0 : index
    %130 = vector.load %arg4[%c25, %c0_41] : memref<27x512xf32, #tpu.memory_space<vmem>>, vector<1x512xf32>
    %131 = vector.broadcast %130 : vector<1x512xf32> to vector<4x512xf32>
    %132 = arith.mulf %129, %131 : vector<4x512xf32>
    %c439_i32 = arith.constant 439 : i32
    %133 = tpu.dynamic_rotate %14 by %c439_i32 dim 1 : vector<4x512xf32>, i32 -> vector<4x512xf32>
    %c26 = arith.constant 26 : index
    %c0_42 = arith.constant 0 : index
    %134 = vector.load %arg4[%c26, %c0_42] : memref<27x512xf32, #tpu.memory_space<vmem>>, vector<1x512xf32>
    %135 = vector.broadcast %134 : vector<1x512xf32> to vector<4x512xf32>
    %136 = arith.mulf %133, %135 : vector<4x512xf32>
    %137 = tpu.concatenate %128, %132, %136, %2 in 0 : vector<4x512xf32>, vector<4x512xf32>, vector<4x512xf32>, vector<4x512xf32> -> vector<16x512xf32>
    %138 = arith.truncf %137 : vector<16x512xf32> to vector<16x512xbf16>
    %c96 = arith.constant 96 : index
    %c0_43 = arith.constant 0 : index
    %139 = vector.load %arg8[%c96, %c0_43] : memref<112x512xbf16, #tpu.memory_space<vmem>>, vector<16x512xbf16>
    tpu.vector_store %arg8[%c96, %c0_43], %138 {strides = array<i32>} : memref<112x512xbf16, #tpu.memory_space<vmem>>, vector<16x512xbf16>,
    %c0_44 = arith.constant 0 : index
    %c0_45 = arith.constant 0 : index
    %140 = vector.load %arg5[%c0_44, %c0_45] : memref<12x112xbf16, #tpu.memory_space<vmem>>, vector<12x112xbf16>
    %c0_46 = arith.constant 0 : index
    %c0_47 = arith.constant 0 : index
    %141 = vector.load %arg8[%c0_46, %c0_47] : memref<112x512xbf16, #tpu.memory_space<vmem>>, vector<112x512xbf16>
    %cst_48 = arith.constant dense<0.000000e+00> : vector<12x512xf32>
    %142 = tpu.matmul %140, %141, %cst_48 {dimension_numbers = #tpu.dot_dimension_numbers<[1], [0], [0], [1], [0, 0, 1, 1], [], []>} : vector<12x112xbf16>, vector<112x512xbf16>, vector<12x512xf32> -> vector<12x512xf32>
    %c0_49 = arith.constant 0 : index
    %c0_50 = arith.constant 0 : index
    %143 = vector.load %arg6[%c0_49, %c0_50] : memref<12x1xf32, #tpu.memory_space<vmem>>, vector<12x1xf32>
    %144 = vector.broadcast %143 : vector<12x1xf32> to vector<12x512xf32>
    %145 = arith.addf %142, %144 : vector<12x512xf32>
    %c0_51 = arith.constant 0 : index
    %c0_52 = arith.constant 0 : index
    %c0_53 = arith.constant 0 : index
    %146 = vector.load %arg7[%c0_51, %c0_52, %c0_53] : memref<1x12x512xf32, #tpu.memory_space<vmem>>, vector<1x12x512xf32>
    %147 = vector.shape_cast %146 : vector<1x12x512xf32> to vector<12x512xf32>
    %148 = vector.shape_cast %145 : vector<12x512xf32> to vector<1x12x512xf32>
    tpu.vector_store %arg7[%c0_51, %c0_52, %c0_53], %148 {strides = array<i32>} : memref<1x12x512xf32, #tpu.memory_space<vmem>>, vector<1x12x512xf32>,
    return
  }
  func.func @transform_0(%arg0: i32) -> (i32, i32, i32) {
    %c0_i32 = arith.constant 0 : i32
    %c0_i32_0 = arith.constant 0 : i32
    %c0_i32_1 = arith.constant 0 : i32
    return %arg0, %c0_i32, %c0_i32_0 : i32, i32, i32
  }
  func.func @transform_1(%arg0: i32) -> (i32, i32) {
    %c0_i32 = arith.constant 0 : i32
    %c0_i32_0 = arith.constant 0 : i32
    %c0_i32_1 = arith.constant 0 : i32
    return %c0_i32, %c0_i32_0 : i32, i32
  }
  func.func @transform_2(%arg0: i32) -> (i32, i32) {
    %c0_i32 = arith.constant 0 : i32
    %c0_i32_0 = arith.constant 0 : i32
    %c0_i32_1 = arith.constant 0 : i32
    return %c0_i32, %c0_i32_0 : i32, i32
  }
  func.func @transform_3(%arg0: i32) -> (i32, i32) {
    %c0_i32 = arith.constant 0 : i32
    %c0_i32_0 = arith.constant 0 : i32
    %c0_i32_1 = arith.constant 0 : i32
    return %c0_i32, %c0_i32_0 : i32, i32
  }
  func.func @transform_4(%arg0: i32) -> (i32, i32) {
    %c0_i32 = arith.constant 0 : i32
    %c0_i32_0 = arith.constant 0 : i32
    %c0_i32_1 = arith.constant 0 : i32
    return %c0_i32, %c0_i32_0 : i32, i32
  }
  func.func @transform_5(%arg0: i32) -> (i32, i32) {
    %c0_i32 = arith.constant 0 : i32
    %c0_i32_0 = arith.constant 0 : i32
    %c0_i32_1 = arith.constant 0 : i32
    return %c0_i32, %c0_i32_0 : i32, i32
  }
  func.func @transform_6(%arg0: i32) -> (i32, i32, i32) {
    %c0_i32 = arith.constant 0 : i32
    %c0_i32_0 = arith.constant 0 : i32
    %c0_i32_1 = arith.constant 0 : i32
    return %arg0, %c0_i32, %c0_i32_0 : i32, i32, i32
  }
}

</mosaic_0001>

<llo_original>
// kernel: tpu_custom_call.1
$region0: #{tpu_custom_call.1}
  #allocation0 [shape = 'u32[]', space=smem, size = 0x4, offset = 0x4, fixed_abs, tag = 'smem constant byte address 0x4 - core index']
  #allocation1 [shape = 'u32[144,128]{1,0:T(1,128)}', space=vmem, size = 0x12000, scoped, tag = 'internal scratch']
  #allocation2 [shape = 'bf16[112,512]{1,0:T(16,128)(2,1)}', space=vmem, size = 0x1c000, scoped, tag = 'scratch operand']
  %s0 = inlined_call_operand.hbm [shape: f32[2,4,512], index: 0, kind: input, shape index: {}]
  %s1 = inlined_call_operand.vmem [shape: f32[4,1], index: 1, kind: input, shape index: {}]
  %s2 = inlined_call_operand.vmem [shape: f32[4,1], index: 2, kind: input, shape index: {}]
  %s3 = inlined_call_operand.hbm [shape: f32[27,512], index: 3, kind: input, shape index: {}]
  %s4 = inlined_call_operand.vmem [shape: bf16[12,112], index: 4, kind: input, shape index: {}]
  %s5 = inlined_call_operand.vmem [shape: f32[12,1], index: 5, kind: input, shape index: {}]
  %s6 = inlined_call_operand.vmem [shape: f32[2,12,512], index: 6, kind: output, shape index: {}]
  %s7 = sld [smem:[#allocation0]]
  $region65: #{tpu_custom_call.1} parent=0
    _
  %s9 = ssub.s32 1, %s7
  %s10 = scalar_select 0, %s9, %s7
  $region1: #{tpu_custom_call.1} parent=0
    #allocation3 [shape = 'u8[16384]{0}', space=vmem, size = 0x4000, scoped, tag = 'input window, operand 0']
    #allocation4 [shape = 's32[2]{0}', space=sflag, size = 0x8, scoped, tag = 'scoped memory for tpu_custom_call.1']
    #allocation5 [shape = 'u8[65536]{0}', space=vmem, size = 0x10000, scoped, tag = 'input window, operand 3, single buffered']
    #allocation6 [shape = 's32[1]{0}', space=sflag, size = 0x4, scoped, tag = 'scoped memory for tpu_custom_call.1']
    %11 = vsyncpa [#allocation4], 0
    %s12 = scalar_lea.sflag [#allocation4], 1
    %13 = vsyncpa %s12, 0
    %14 = vsyncpa [#allocation6], 0
    loop: start=0, step=1, limit=4
    $region2: #{tpu_custom_call.1} parent=1 // loop_pre_header
      _
    $region3: #{tpu_custom_call.1} parent=1 // loop_header
      %s16 = sphi 0, %s20
      %p17 = scmp.ge.s32.totalorder %s16, 4
      %s26 = sphi 0, %s28
      %s29 = sphi 0, %s26
      %s30 = sphi 0, %s29
      %s46 = sphi 0, %s30
      %s50 = sphi 0, %s50
      %s52 = sphi 0, %s50
      %s53 = sphi 0, %s52
      %s67 = sphi 0, %s53
      %s71 = sphi 0, %s71
      %s73 = sphi 0, %s71
      %s74 = sphi 0, %s73
      %s88 = sphi 0, %s74
      %s92 = sphi 0, %s92
      %s94 = sphi 0, %s92
      %s95 = sphi 0, %s94
      %s109 = sphi 0, %s95
      %s113 = sphi 0, %s113
      %s115 = sphi 0, %s113
      %s116 = sphi 0, %s115
      %s130 = sphi 0, %s116
      %s134 = sphi 0, %s134
      %s136 = sphi 0, %s134
      %s137 = sphi 0, %s136
      %s151 = sphi 0, %s137
      %s157 = sphi 0, %s159
      %s160 = sphi 0, %s157
      %s161 = sphi 0, %s160
      %s177 = sphi 0, %s161
    $region4: #{tpu_custom_call.1} parent=1 // loop_header_branch
      %19 = sbr.rel (%p17) target = $region8
    $region5: #{tpu_custom_call.1} parent=1 // loop_body
      %s21 = ssub.s32 %s16, 1
      %s22 = ssub.s32 %s16, 2
      %s23 = sadd.s32 %s16, 1
      %s24 = ssub.s32 %s16, %s23
      %p25 = scmp.eq.s32.totalorder %s24, 0
      %s27 = sadd.s32 %s26, 1
      %s28 = scalar_select %p25, %s26, %s27
      %p31 = pneg %p25
      %p32 = scmp.eq.s32.totalorder %s16, 1
      %p33 = por %p31, %p32
      %p34 = scmp.ne.s32.totalorder %s26, %s29
      %p35 = scmp.eq.s32.totalorder %s16, 0
      %p36 = por %p34, %p35
      %p37 = scmp.ne.s32.totalorder %s26, %s29
      %p38 = scmp.eq.s32.totalorder %s21, 1
      %p39 = por %p37, %p38
      %p40 = scmp.ne.s32.totalorder %s29, %s30
      %p41 = scmp.eq.s32.totalorder %s21, 0
      %p42 = por %p40, %p41
      %p43 = scmp.ne.s32.totalorder %s29, %s30
      %p44 = scmp.eq.s32.totalorder %s22, 1
      %p45 = por %p43, %p44
      %p47 = scmp.ne.s32.totalorder %s30, %s46
      %p48 = scmp.eq.s32.totalorder %s22, 0
      %p49 = por %p47, %p48
      %s51 = sadd.s32 %s50, 1
      %p54 = scmp.eq.s32.totalorder %s16, 1
      %p55 = scmp.ne.s32.totalorder %s50, %s52
      %p56 = scmp.eq.s32.totalorder %s16, 0
      %p57 = por %p55, %p56
      %p58 = scmp.ne.s32.totalorder %s50, %s52
      %p59 = scmp.eq.s32.totalorder %s21, 1
      %p60 = por %p58, %p59
      %p61 = scmp.ne.s32.totalorder %s52, %s53
      %p62 = scmp.eq.s32.totalorder %s21, 0
      %p63 = por %p61, %p62
      %p64 = scmp.ne.s32.totalorder %s52, %s53
      %p65 = scmp.eq.s32.totalorder %s22, 1
      %p66 = por %p64, %p65
      %p68 = scmp.ne.s32.totalorder %s53, %s67
      %p69 = scmp.eq.s32.totalorder %s22, 0
      %p70 = por %p68, %p69
      %s72 = sadd.s32 %s71, 1
      %p75 = scmp.eq.s32.totalorder %s16, 1
      %p76 = scmp.ne.s32.totalorder %s71, %s73
      %p77 = scmp.eq.s32.totalorder %s16, 0
      %p78 = por %p76, %p77
      %p79 = scmp.ne.s32.totalorder %s71, %s73
      %p80 = scmp.eq.s32.totalorder %s21, 1
      %p81 = por %p79, %p80
      %p82 = scmp.ne.s32.totalorder %s73, %s74
      %p83 = scmp.eq.s32.totalorder %s21, 0
      %p84 = por %p82, %p83
      %p85 = scmp.ne.s32.totalorder %s73, %s74
      %p86 = scmp.eq.s32.totalorder %s22, 1
      %p87 = por %p85, %p86
      %p89 = scmp.ne.s32.totalorder %s74, %s88
      %p90 = scmp.eq.s32.totalorder %s22, 0
      %p91 = por %p89, %p90
      %s93 = sadd.s32 %s92, 1
      %p96 = scmp.eq.s32.totalorder %s16, 1
      %p97 = scmp.ne.s32.totalorder %s92, %s94
      %p98 = scmp.eq.s32.totalorder %s16, 0
      %p99 = por %p97, %p98
      %p100 = scmp.ne.s32.totalorder %s92, %s94
      %p101 = scmp.eq.s32.totalorder %s21, 1
      %p102 = por %p100, %p101
      %p103 = scmp.ne.s32.totalorder %s94, %s95
      %p104 = scmp.eq.s32.totalorder %s21, 0
      %p105 = por %p103, %p104
      %p106 = scmp.ne.s32.totalorder %s94, %s95
      %p107 = scmp.eq.s32.totalorder %s22, 1
      %p108 = por %p106, %p107
      %p110 = scmp.ne.s32.totalorder %s95, %s109
      %p111 = scmp.eq.s32.totalorder %s22, 0
      %p112 = por %p110, %p111
      %s114 = sadd.s32 %s113, 1
      %p117 = scmp.eq.s32.totalorder %s16, 1
      %p118 = scmp.ne.s32.totalorder %s113, %s115
      %p119 = scmp.eq.s32.totalorder %s16, 0
      %p120 = por %p118, %p119
      %p121 = scmp.ne.s32.totalorder %s113, %s115
      %p122 = scmp.eq.s32.totalorder %s21, 1
      %p123 = por %p121, %p122
      %p124 = scmp.ne.s32.totalorder %s115, %s116
      %p125 = scmp.eq.s32.totalorder %s21, 0
      %p126 = por %p124, %p125
      %p127 = scmp.ne.s32.totalorder %s115, %s116
      %p128 = scmp.eq.s32.totalorder %s22, 1
      %p129 = por %p127, %p128
      %p131 = scmp.ne.s32.totalorder %s116, %s130
      %p132 = scmp.eq.s32.totalorder %s22, 0
      %p133 = por %p131, %p132
      %s135 = sadd.s32 %s134, 1
      %p138 = scmp.eq.s32.totalorder %s16, 1
      %p139 = scmp.ne.s32.totalorder %s134, %s136
      %p140 = scmp.eq.s32.totalorder %s16, 0
      %p141 = por %p139, %p140
      %p142 = scmp.ne.s32.totalorder %s134, %s136
      %p143 = scmp.eq.s32.totalorder %s21, 1
      %p144 = por %p142, %p143
      %p145 = scmp.ne.s32.totalorder %s136, %s137
      %p146 = scmp.eq.s32.totalorder %s21, 0
      %p147 = por %p145, %p146
      %p148 = scmp.ne.s32.totalorder %s136, %s137
      %p149 = scmp.eq.s32.totalorder %s22, 1
      %p150 = por %p148, %p149
      %p152 = scmp.ne.s32.totalorder %s137, %s151
      %p153 = scmp.eq.s32.totalorder %s22, 0
      %p154 = por %p152, %p153
      %s155 = ssub.s32 %s16, %s23
      %p156 = scmp.eq.s32.totalorder %s155, 0
      %s158 = sadd.s32 %s157, 1
      %s159 = scalar_select %p156, %s157, %s158
      %p162 = pneg %p156
      %p163 = scmp.eq.s32.totalorder %s16, 1
      %p164 = por %p162, %p163
      %p165 = scmp.ne.s32.totalorder %s157, %s160
      %p166 = scmp.eq.s32.totalorder %s16, 0
      %p167 = por %p165, %p166
      %p168 = scmp.ne.s32.totalorder %s157, %s160
      %p169 = scmp.eq.s32.totalorder %s21, 1
      %p170 = por %p168, %p169
      %p171 = scmp.ne.s32.totalorder %s160, %s161
      %p172 = scmp.eq.s32.totalorder %s21, 0
      %p173 = por %p171, %p172
      %p174 = scmp.ne.s32.totalorder %s160, %s161
      %p175 = scmp.eq.s32.totalorder %s22, 1
      %p176 = por %p174, %p175
      %p178 = scmp.ne.s32.totalorder %s161, %s177
      %p179 = scmp.eq.s32.totalorder %s22, 0
      %p180 = por %p178, %p179
      %p181 = scmp.le.s32.totalorder 1, %s16
      %p182 = scmp.lt.s32.totalorder %s16, 3
      %p183 = pnand %p181, %p182
      %p184 = pneg %p183
      // Predicated region
      $region9: #{tpu_custom_call.1} parent=5 // pred_check
        _
      $region10: #{tpu_custom_call.1} parent=5 // pred_check_branch
        %186 = sbr.rel (%p183) target = $region12
      $region11: #{tpu_custom_call.1} parent=5 // pred_region
        %s187 = ssub.s32 %s16, 1
        // Predicated region
        $region13: #{tpu_custom_call.1} parent=11 // pred_check
          %p188 = pneg %p63
        $region14: #{tpu_custom_call.1} parent=11 // pred_check_branch
          %190 = sbr.rel (%p188) target = $region16
        $region15: #{tpu_custom_call.1} parent=11 // pred_region
          _
        $region16: #{tpu_custom_call.1} parent=11 // pred_fallthru
          _
        // Predicated region
        $region17: #{tpu_custom_call.1} parent=11 // pred_check
          %p191 = pneg %p84
        $region18: #{tpu_custom_call.1} parent=11 // pred_check_branch
          %193 = sbr.rel (%p191) target = $region20
        $region19: #{tpu_custom_call.1} parent=11 // pred_region
          _
        $region20: #{tpu_custom_call.1} parent=11 // pred_fallthru
          _
        // Predicated region
        $region21: #{tpu_custom_call.1} parent=11 // pred_check
          %p194 = pneg %p105
        $region22: #{tpu_custom_call.1} parent=11 // pred_check_branch
          %196 = sbr.rel (%p194) target = $region24
        $region23: #{tpu_custom_call.1} parent=11 // pred_region
          %s198 = ssub.s32 2048, 2048
          %199 = vsyncadd [#allocation6], %s198
          %s200 = sshll.u32 [#allocation5], 4
          %s201 = int_to_ptr.vmem [resolvable:$true] %s200
          %206 = dma.hbm_to_vmem [thread:$0]  %s3, 2048, %s201, [#allocation6], 512, 512, 32
        $region24: #{tpu_custom_call.1} parent=11 // pred_fallthru
          _
        // Predicated region
        $region25: #{tpu_custom_call.1} parent=11 // pred_check
          %p207 = pneg %p126
        $region26: #{tpu_custom_call.1} parent=11 // pred_check_branch
          %209 = sbr.rel (%p207) target = $region28
        $region27: #{tpu_custom_call.1} parent=11 // pred_region
          _
        $region28: #{tpu_custom_call.1} parent=11 // pred_fallthru
          _
        // Predicated region
        $region29: #{tpu_custom_call.1} parent=11 // pred_check
          %p210 = pneg %p147
        $region30: #{tpu_custom_call.1} parent=11 // pred_check_branch
          %212 = sbr.rel (%p210) target = $region32
        $region31: #{tpu_custom_call.1} parent=11 // pred_region
          _
        $region32: #{tpu_custom_call.1} parent=11 // pred_fallthru
          _
      $region12: #{tpu_custom_call.1} parent=5 // pred_fallthru
        _
      %p213 = scmp.lt.s32.totalorder %s16, 2
      // Predicated region
      $region33: #{tpu_custom_call.1} parent=5 // pred_check
        %p214 = pneg %p213
      $region34: #{tpu_custom_call.1} parent=5 // pred_check_branch
        %216 = sbr.rel (%p214) target = $region36
      $region35: #{tpu_custom_call.1} parent=5 // pred_region
        // Predicated region
        $region37: #{tpu_custom_call.1} parent=35 // pred_check
          %p217 = pneg %p36
        $region38: #{tpu_custom_call.1} parent=35 // pred_check_branch
          %219 = sbr.rel (%p217) target = $region40
        $region39: #{tpu_custom_call.1} parent=35 // pred_region
          %s220 = sand.u32 %s26, 1
          %s221 = scalar_lea.sflag [#allocation4], %s220
          %s222 = sand.u32 %s26, 1
          %s223 = smul.addr %s222, 16
          %s224 = scalar_lea.vmem [#allocation3], %s223
          %s226 = ssub.s32 256, 256
          %227 = vsyncadd %s221, %s226
          %s228 = smul.addr %s16, 4
          %s229 = smul.addr %s228, 64
          %s230 = scalar_lea.hbm %s0, %s229
          %s232 = sshll.u32 %s224, 4
          %s233 = int_to_ptr.vmem [resolvable:$true] %s232
          %235 = dma.hbm_to_vmem [thread:$0]  %s230, 256, %s233, %s221
        $region40: #{tpu_custom_call.1} parent=35 // pred_fallthru
          _
      $region36: #{tpu_custom_call.1} parent=5 // pred_fallthru
        _
      %p236 = scmp.le.s32.totalorder 1, %s16
      %p237 = scmp.lt.s32.totalorder %s16, 3
      %p238 = pnand %p236, %p237
      %p239 = pneg %p238
      // Predicated region
      $region41: #{tpu_custom_call.1} parent=5 // pred_check
        _
      $region42: #{tpu_custom_call.1} parent=5 // pred_check_branch
        %241 = sbr.rel (%p238) target = $region44
      $region43: #{tpu_custom_call.1} parent=5 // pred_region
        %s242 = ssub.s32 %s16, 1
        %s243 = sand.u32 %s29, 1
        %s244 = scalar_lea.sflag [#allocation4], %s243
        %s245 = sand.u32 %s29, 1
        %s246 = smul.addr %s245, 16
        %s247 = scalar_lea.vmem [#allocation3], %s246
        // Predicated region
        $region45: #{tpu_custom_call.1} parent=43 // pred_check
          %p248 = pneg %p42
        $region46: #{tpu_custom_call.1} parent=43 // pred_check_branch
          %250 = sbr.rel (%p248) target = $region48
        $region47: #{tpu_custom_call.1} parent=43 // pred_region
          %251 = dma.done %s244, 256
        $region48: #{tpu_custom_call.1} parent=43 // pred_fallthru
          _
        // Predicated region
        $region49: #{tpu_custom_call.1} parent=43 // pred_check
          %p252 = pneg %p105
        $region50: #{tpu_custom_call.1} parent=43 // pred_check_branch
          %254 = sbr.rel (%p252) target = $region52
        $region51: #{tpu_custom_call.1} parent=43 // pred_region
          %255 = dma.done [#allocation6], 2048
        $region52: #{tpu_custom_call.1} parent=43 // pred_fallthru
          _
        %s256 = sand.u32 %s29, 1
        %s257 = scalar_lea.sflag [#allocation4], %s256
        %s258 = sand.u32 %s29, 1
        %s259 = smul.addr %s258, 16
        %s260 = scalar_lea.vmem [#allocation3], %s259
        %p261 = pneg %p42
        %p262 = pneg %p39
        %p263 = pneg %p63
        %p264 = pneg %p60
        %p265 = pneg %p84
        %p266 = pneg %p81
        %p267 = pneg %p105
        %p268 = pneg %p102
        %p269 = pneg %p126
        %p270 = pneg %p123
        %p271 = pneg %p147
        %p272 = pneg %p144
        %p273 = pneg %p173
        %p274 = pneg %p170
        %p275 = scmp.lt.s32.totalorder %s21, 1
        %s276 = scalar_select %p275, %s21, 1
        %s277 = smul.addr %s276, 8
        %s278 = smul.addr %s277, 8
        %s279 = scalar_lea.vmem %s6, %s278
        %p280 = scmp.lt.s32.totalorder %s21, 1
        %s281 = scalar_select %p280, %s21, 1
        %s282 = smul.addr %s281, 8
        %s283 = smul.addr %s282, 8
        %s284 = scalar_lea.vmem %s6, %s283
        %v286 = vld [vmem:[%s1] sm:$0xf]
        %v287 = vld [vmem:[%s2] sm:$0xf]
        %v288 = vld [vmem:[%s247] sm:$0xff]
        %v289 = vld [vmem:[%s247 + $0x8] sm:$0xff]
        %291 = vset.pattern.permute.xlu0 0
        %292 = vperm.xlu0 %291, %v286
        %v293 = vpop.permute.xlu0 %292
        %v295 = vunpack.c.l.s4 839922192
        %v296 = vunpack.c.0.s8 %v295
        %v297 = vlaneseq
        %v298 = vshrl.u32 %v297, 7
        %v299 = vsub.s32 %v296, %v298
        %v300 = vrot.slane %v293, %v299
        %v302 = vmul.f32 %v288, %v300
        %v303 = vmul.f32 %v289, %v300
        %305 = vset.pattern.permute.xlu0 0
        %306 = vperm.xlu0 %305, %v287
        %v307 = vpop.permute.xlu0 %306
        %v309 = vunpack.c.l.s4 839922192
        %v310 = vunpack.c.0.s8 %v309
        %v311 = vlaneseq
        %v312 = vshrl.u32 %v311, 7
        %v313 = vsub.s32 %v310, %v312
        %v314 = vrot.slane %v307, %v313
        %v316 = vadd.f32 %v302, %v314
        %v317 = vadd.f32 %v303, %v314
        %vm318 = vcmp.gt.f32.partialorder %v316, 0.0
        %vm319 = vcmp.gt.f32.partialorder %v317, 0.0
        %v320 = vmul.f32 %v316, 1.442695
        %v321 = vpow.pop %v320
        %v322 = vmul.f32 %v317, 1.442695
        %v323 = vpow.pop %v322
        %v324 = vsub.f32 %v321, 1.0
        %v325 = vsub.f32 %v323, 1.0
        %v326 = vsel %vm318, %v316, %v324
        %v327 = vsel %vm319, %v317, %v325
        %v330 = vcombine.high %v326, %v326
        %v331 = vcombine.high %v327, %v327
        %334 = vrot.lane.b32.xlu0 %v326, 73
        %v335 = vpop.permute.xlu0 %334
        %336 = vrot.lane.b32.xlu0 %v330, 73
        %v337 = vpop.permute.xlu0 %336
        %338 = vrot.lane.b32.xlu0 %v327, 73
        %v339 = vpop.permute.xlu0 %338
        %340 = vrot.lane.b32.xlu0 %v331, 73
        %v341 = vpop.permute.xlu0 %340
        %v342 = vlaneseq
        %v343 = vand.u32 %v342, 127
        %vm344 = vcmp.lt.s32.totalorder %v343, 73
        %v345 = vsel %vm344, %v339, %v341
        %v346 = vsel %vm344, %v337, %v339
        %v347 = vsel %vm344, %v335, %v337
        %v348 = vsel %vm344, %v341, %v335
        %v349 = vld [vmem:[#allocation5] ss:$8 sm:$0xf]
        %v351 = vlaneseq
        %v352 = vshrl.u32 %v351, 7
        %v353 = vsub.s32 0, %v352
        %v354 = vrot.slane %v349, %v353
        %v355 = vlaneseq
        %v356 = vshrl.u32 %v355, 7
        %v357 = vsub.s32 1, %v356
        %v358 = vrot.slane %v349, %v357
        %v359 = vlaneseq
        %v360 = vshrl.u32 %v359, 7
        %v361 = vsub.s32 2, %v360
        %v362 = vrot.slane %v349, %v361
        %v363 = vlaneseq
        %v364 = vshrl.u32 %v363, 7
        %v365 = vsub.s32 3, %v364
        %v366 = vrot.slane %v349, %v365
        %v371 = vmul.f32 %v348, %v354
        %v372 = vmul.f32 %v347, %v358
        %v373 = vmul.f32 %v346, %v362
        %v374 = vmul.f32 %v345, %v366
        %375 = vrot.lane.b32.xlu0 %v326, 72
        %v376 = vpop.permute.xlu0 %375
        %377 = vrot.lane.b32.xlu0 %v330, 72
        %v378 = vpop.permute.xlu0 %377
        %379 = vrot.lane.b32.xlu0 %v327, 72
        %v380 = vpop.permute.xlu0 %379
        %381 = vrot.lane.b32.xlu0 %v331, 72
        %v382 = vpop.permute.xlu0 %381
        %vm383 = vcmp.lt.s32.totalorder %v343, 72
        %v384 = vsel %vm383, %v380, %v382
        %v385 = vsel %vm383, %v378, %v380
        %v386 = vsel %vm383, %v376, %v378
        %v387 = vsel %vm383, %v382, %v376
        %s388 = scalar_lea.vmem [#allocation5], 1
        %v389 = vld [vmem:[%s388] ss:$8 sm:$0xf]
        %v391 = vlaneseq
        %v392 = vshrl.u32 %v391, 7
        %v393 = vsub.s32 0, %v392
        %v394 = vrot.slane %v389, %v393
        %v395 = vlaneseq
        %v396 = vshrl.u32 %v395, 7
        %v397 = vsub.s32 1, %v396
        %v398 = vrot.slane %v389, %v397
        %v399 = vlaneseq
        %v400 = vshrl.u32 %v399, 7
        %v401 = vsub.s32 2, %v400
        %v402 = vrot.slane %v389, %v401
        %v403 = vlaneseq
        %v404 = vshrl.u32 %v403, 7
        %v405 = vsub.s32 3, %v404
        %v406 = vrot.slane %v389, %v405
        %v411 = vmul.f32 %v387, %v394
        %v412 = vmul.f32 %v386, %v398
        %v413 = vmul.f32 %v385, %v402
        %v414 = vmul.f32 %v384, %v406
        %415 = vrot.lane.b32.xlu0 %v326, 71
        %v416 = vpop.permute.xlu0 %415
        %417 = vrot.lane.b32.xlu0 %v330, 71
        %v418 = vpop.permute.xlu0 %417
        %419 = vrot.lane.b32.xlu0 %v327, 71
        %v420 = vpop.permute.xlu0 %419
        %421 = vrot.lane.b32.xlu0 %v331, 71
        %v422 = vpop.permute.xlu0 %421
        %vm423 = vcmp.lt.s32.totalorder %v343, 71
        %v424 = vsel %vm423, %v420, %v422
        %v425 = vsel %vm423, %v418, %v420
        %v426 = vsel %vm423, %v416, %v418
        %v427 = vsel %vm423, %v422, %v416
        %s428 = scalar_lea.vmem [#allocation5], 2
        %v429 = vld [vmem:[%s428] ss:$8 sm:$0xf]
        %v431 = vlaneseq
        %v432 = vshrl.u32 %v431, 7
        %v433 = vsub.s32 0, %v432
        %v434 = vrot.slane %v429, %v433
        %v435 = vlaneseq
        %v436 = vshrl.u32 %v435, 7
        %v437 = vsub.s32 1, %v436
        %v438 = vrot.slane %v429, %v437
        %v439 = vlaneseq
        %v440 = vshrl.u32 %v439, 7
        %v441 = vsub.s32 2, %v440
        %v442 = vrot.slane %v429, %v441
        %v443 = vlaneseq
        %v444 = vshrl.u32 %v443, 7
        %v445 = vsub.s32 3, %v444
        %v446 = vrot.slane %v429, %v445
        %v451 = vmul.f32 %v427, %v434
        %v452 = vmul.f32 %v426, %v438
        %v453 = vmul.f32 %v425, %v442
        %v454 = vmul.f32 %v424, %v446
        %455 = vrot.lane.b32.xlu0 %v326, 65
        %v456 = vpop.permute.xlu0 %455
        %457 = vrot.lane.b32.xlu0 %v330, 65
        %v458 = vpop.permute.xlu0 %457
        %459 = vrot.lane.b32.xlu0 %v327, 65
        %v460 = vpop.permute.xlu0 %459
        %461 = vrot.lane.b32.xlu0 %v331, 65
        %v462 = vpop.permute.xlu0 %461
        %vm463 = vcmp.lt.s32.totalorder %v343, 65
        %v464 = vsel %vm463, %v460, %v462
        %v465 = vsel %vm463, %v458, %v460
        %v466 = vsel %vm463, %v456, %v458
        %v467 = vsel %vm463, %v462, %v456
        %s468 = scalar_lea.vmem [#allocation5], 3
        %v469 = vld [vmem:[%s468] ss:$8 sm:$0xf]
        %v471 = vlaneseq
        %v472 = vshrl.u32 %v471, 7
        %v473 = vsub.s32 0, %v472
        %v474 = vrot.slane %v469, %v473
        %v475 = vlaneseq
        %v476 = vshrl.u32 %v475, 7
        %v477 = vsub.s32 1, %v476
        %v478 = vrot.slane %v469, %v477
        %v479 = vlaneseq
        %v480 = vshrl.u32 %v479, 7
        %v481 = vsub.s32 2, %v480
        %v482 = vrot.slane %v469, %v481
        %v483 = vlaneseq
        %v484 = vshrl.u32 %v483, 7
        %v485 = vsub.s32 3, %v484
        %v486 = vrot.slane %v469, %v485
        %v491 = vmul.f32 %v467, %v474
        %v492 = vmul.f32 %v466, %v478
        %v493 = vmul.f32 %v465, %v482
        %v494 = vmul.f32 %v464, %v486
        %v499 = vrot.slane %v411, 4
        %v500 = vrot.slane %v412, 4
        %v501 = vrot.slane %v413, 4
        %v502 = vrot.slane %v414, 4
        %v511 = vrot.slane %v491, 4
        %v512 = vrot.slane %v492, 4
        %v513 = vrot.slane %v493, 4
        %v514 = vrot.slane %v494, 4
        %vm519 = vcmask 1043456
        %v520 = vsel %vm519, %v371, %v499
        %v521 = vsel %vm519, %v372, %v500
        %v522 = vsel %vm519, %v373, %v501
        %v523 = vsel %vm519, %v374, %v502
        %v524 = vsel %vm519, %v451, %v511
        %v525 = vsel %vm519, %v452, %v512
        %v526 = vsel %vm519, %v453, %v513
        %v527 = vsel %vm519, %v454, %v514
        %v528 = vpack.c.bf16 %v524, %v520
        %v529 = vpack.c.bf16 %v525, %v521
        %v530 = vpack.c.bf16 %v526, %v522
        %v531 = vpack.c.bf16 %v527, %v523
        %532 = vst [vmem:[#allocation2] sm:$0xff] %v528
        %533 = vst [vmem:[#allocation2 + $0x8] sm:$0xff] %v529
        %534 = vst [vmem:[#allocation2 + $0x10] sm:$0xff] %v530
        %535 = vst [vmem:[#allocation2 + $0x18] sm:$0xff] %v531
        %536 = vrot.lane.b32.xlu0 %v326, 64
        %v537 = vpop.permute.xlu0 %536
        %538 = vrot.lane.b32.xlu0 %v330, 64
        %v539 = vpop.permute.xlu0 %538
        %540 = vrot.lane.b32.xlu0 %v327, 64
        %v541 = vpop.permute.xlu0 %540
        %542 = vrot.lane.b32.xlu0 %v331, 64
        %v543 = vpop.permute.xlu0 %542
        %vm544 = vcmp.lt.s32.totalorder %v343, 64
        %v545 = vsel %vm544, %v541, %v543
        %v546 = vsel %vm544, %v539, %v541
        %v547 = vsel %vm544, %v537, %v539
        %v548 = vsel %vm544, %v543, %v537
        %s549 = scalar_lea.vmem [#allocation5], 4
        %v550 = vld [vmem:[%s549] ss:$8 sm:$0xf]
        %v552 = vlaneseq
        %v553 = vshrl.u32 %v552, 7
        %v554 = vsub.s32 0, %v553
        %v555 = vrot.slane %v550, %v554
        %v556 = vlaneseq
        %v557 = vshrl.u32 %v556, 7
        %v558 = vsub.s32 1, %v557
        %v559 = vrot.slane %v550, %v558
        %v560 = vlaneseq
        %v561 = vshrl.u32 %v560, 7
        %v562 = vsub.s32 2, %v561
        %v563 = vrot.slane %v550, %v562
        %v564 = vlaneseq
        %v565 = vshrl.u32 %v564, 7
        %v566 = vsub.s32 3, %v565
        %v567 = vrot.slane %v550, %v566
        %v572 = vmul.f32 %v548, %v555
        %v573 = vmul.f32 %v547, %v559
        %v574 = vmul.f32 %v546, %v563
        %v575 = vmul.f32 %v545, %v567
        %576 = vrot.lane.b32.xlu0 %v326, 63
        %v577 = vpop.permute.xlu0 %576
        %578 = vrot.lane.b32.xlu0 %v330, 63
        %v579 = vpop.permute.xlu0 %578
        %580 = vrot.lane.b32.xlu0 %v327, 63
        %v581 = vpop.permute.xlu0 %580
        %582 = vrot.lane.b32.xlu0 %v331, 63
        %v583 = vpop.permute.xlu0 %582
        %vm584 = vcmp.lt.s32.totalorder %v343, 63
        %v585 = vsel %vm584, %v581, %v583
        %v586 = vsel %vm584, %v579, %v581
        %v587 = vsel %vm584, %v577, %v579
        %v588 = vsel %vm584, %v583, %v577
        %s589 = scalar_lea.vmem [#allocation5], 5
        %v590 = vld [vmem:[%s589] ss:$8 sm:$0xf]
        %v592 = vlaneseq
        %v593 = vshrl.u32 %v592, 7
        %v594 = vsub.s32 0, %v593
        %v595 = vrot.slane %v590, %v594
        %v596 = vlaneseq
        %v597 = vshrl.u32 %v596, 7
        %v598 = vsub.s32 1, %v597
        %v599 = vrot.slane %v590, %v598
        %v600 = vlaneseq
        %v601 = vshrl.u32 %v600, 7
        %v602 = vsub.s32 2, %v601
        %v603 = vrot.slane %v590, %v602
        %v604 = vlaneseq
        %v605 = vshrl.u32 %v604, 7
        %v606 = vsub.s32 3, %v605
        %v607 = vrot.slane %v590, %v606
        %v612 = vmul.f32 %v588, %v595
        %v613 = vmul.f32 %v587, %v599
        %v614 = vmul.f32 %v586, %v603
        %v615 = vmul.f32 %v585, %v607
        %616 = vrot.lane.b32.xlu0 %v326, 57
        %v617 = vpop.permute.xlu0 %616
        %618 = vrot.lane.b32.xlu0 %v330, 57
        %v619 = vpop.permute.xlu0 %618
        %620 = vrot.lane.b32.xlu0 %v327, 57
        %v621 = vpop.permute.xlu0 %620
        %622 = vrot.lane.b32.xlu0 %v331, 57
        %v623 = vpop.permute.xlu0 %622
        %vm624 = vcmp.lt.s32.totalorder %v343, 57
        %v625 = vsel %vm624, %v621, %v623
        %v626 = vsel %vm624, %v619, %v621
        %v627 = vsel %vm624, %v617, %v619
        %v628 = vsel %vm624, %v623, %v617
        %s629 = scalar_lea.vmem [#allocation5], 6
        %v630 = vld [vmem:[%s629] ss:$8 sm:$0xf]
        %v632 = vlaneseq
        %v633 = vshrl.u32 %v632, 7
        %v634 = vsub.s32 0, %v633
        %v635 = vrot.slane %v630, %v634
        %v636 = vlaneseq
        %v637 = vshrl.u32 %v636, 7
        %v638 = vsub.s32 1, %v637
        %v639 = vrot.slane %v630, %v638
        %v640 = vlaneseq
        %v641 = vshrl.u32 %v640, 7
        %v642 = vsub.s32 2, %v641
        %v643 = vrot.slane %v630, %v642
        %v644 = vlaneseq
        %v645 = vshrl.u32 %v644, 7
        %v646 = vsub.s32 3, %v645
        %v647 = vrot.slane %v630, %v646
        %v652 = vmul.f32 %v628, %v635
        %v653 = vmul.f32 %v627, %v639
        %v654 = vmul.f32 %v626, %v643
        %v655 = vmul.f32 %v625, %v647
        %656 = vrot.lane.b32.xlu0 %v326, 56
        %v657 = vpop.permute.xlu0 %656
        %658 = vrot.lane.b32.xlu0 %v330, 56
        %v659 = vpop.permute.xlu0 %658
        %660 = vrot.lane.b32.xlu0 %v327, 56
        %v661 = vpop.permute.xlu0 %660
        %662 = vrot.lane.b32.xlu0 %v331, 56
        %v663 = vpop.permute.xlu0 %662
        %vm664 = vcmp.lt.s32.totalorder %v343, 56
        %v665 = vsel %vm664, %v661, %v663
        %v666 = vsel %vm664, %v659, %v661
        %v667 = vsel %vm664, %v657, %v659
        %v668 = vsel %vm664, %v663, %v657
        %s669 = scalar_lea.vmem [#allocation5], 7
        %v670 = vld [vmem:[%s669] ss:$8 sm:$0xf]
        %v672 = vlaneseq
        %v673 = vshrl.u32 %v672, 7
        %v674 = vsub.s32 0, %v673
        %v675 = vrot.slane %v670, %v674
        %v676 = vlaneseq
        %v677 = vshrl.u32 %v676, 7
        %v678 = vsub.s32 1, %v677
        %v679 = vrot.slane %v670, %v678
        %v680 = vlaneseq
        %v681 = vshrl.u32 %v680, 7
        %v682 = vsub.s32 2, %v681
        %v683 = vrot.slane %v670, %v682
        %v684 = vlaneseq
        %v685 = vshrl.u32 %v684, 7
        %v686 = vsub.s32 3, %v685
        %v687 = vrot.slane %v670, %v686
        %v692 = vmul.f32 %v668, %v675
        %v693 = vmul.f32 %v667, %v679
        %v694 = vmul.f32 %v666, %v683
        %v695 = vmul.f32 %v665, %v687
        %v700 = vrot.slane %v612, 4
        %v701 = vrot.slane %v613, 4
        %v702 = vrot.slane %v614, 4
        %v703 = vrot.slane %v615, 4
        %v712 = vrot.slane %v692, 4
        %v713 = vrot.slane %v693, 4
        %v714 = vrot.slane %v694, 4
        %v715 = vrot.slane %v695, 4
        %v720 = vsel %vm519, %v572, %v700
        %v721 = vsel %vm519, %v573, %v701
        %v722 = vsel %vm519, %v574, %v702
        %v723 = vsel %vm519, %v575, %v703
        %v724 = vsel %vm519, %v652, %v712
        %v725 = vsel %vm519, %v653, %v713
        %v726 = vsel %vm519, %v654, %v714
        %v727 = vsel %vm519, %v655, %v715
        %v728 = vpack.c.bf16 %v724, %v720
        %v729 = vpack.c.bf16 %v725, %v721
        %v730 = vpack.c.bf16 %v726, %v722
        %v731 = vpack.c.bf16 %v727, %v723
        %732 = vst [vmem:[#allocation2 + $0x20] sm:$0xff] %v728
        %733 = vst [vmem:[#allocation2 + $0x28] sm:$0xff] %v729
        %734 = vst [vmem:[#allocation2 + $0x30] sm:$0xff] %v730
        %735 = vst [vmem:[#allocation2 + $0x38] sm:$0xff] %v731
        %736 = vrot.lane.b32.xlu0 %v326, 55
        %v737 = vpop.permute.xlu0 %736
        %738 = vrot.lane.b32.xlu0 %v330, 55
        %v739 = vpop.permute.xlu0 %738
        %740 = vrot.lane.b32.xlu0 %v327, 55
        %v741 = vpop.permute.xlu0 %740
        %742 = vrot.lane.b32.xlu0 %v331, 55
        %v743 = vpop.permute.xlu0 %742
        %vm744 = vcmp.lt.s32.totalorder %v343, 55
        %v745 = vsel %vm744, %v741, %v743
        %v746 = vsel %vm744, %v739, %v741
        %v747 = vsel %vm744, %v737, %v739
        %v748 = vsel %vm744, %v743, %v737
        %s749 = scalar_lea.vmem [#allocation5], 32
        %v750 = vld [vmem:[%s749] ss:$8 sm:$0xf]
        %v752 = vlaneseq
        %v753 = vshrl.u32 %v752, 7
        %v754 = vsub.s32 0, %v753
        %v755 = vrot.slane %v750, %v754
        %v756 = vlaneseq
        %v757 = vshrl.u32 %v756, 7
        %v758 = vsub.s32 1, %v757
        %v759 = vrot.slane %v750, %v758
        %v760 = vlaneseq
        %v761 = vshrl.u32 %v760, 7
        %v762 = vsub.s32 2, %v761
        %v763 = vrot.slane %v750, %v762
        %v764 = vlaneseq
        %v765 = vshrl.u32 %v764, 7
        %v766 = vsub.s32 3, %v765
        %v767 = vrot.slane %v750, %v766
        %v772 = vmul.f32 %v748, %v755
        %v773 = vmul.f32 %v747, %v759
        %v774 = vmul.f32 %v746, %v763
        %v775 = vmul.f32 %v745, %v767
        %776 = vrot.lane.b32.xlu0 %v326, 9
        %v777 = vpop.permute.xlu0 %776
        %778 = vrot.lane.b32.xlu0 %v330, 9
        %v779 = vpop.permute.xlu0 %778
        %780 = vrot.lane.b32.xlu0 %v327, 9
        %v781 = vpop.permute.xlu0 %780
        %782 = vrot.lane.b32.xlu0 %v331, 9
        %v783 = vpop.permute.xlu0 %782
        %vm784 = vcmp.lt.s32.totalorder %v343, 9
        %v785 = vsel %vm784, %v781, %v783
        %v786 = vsel %vm784, %v779, %v781
        %v787 = vsel %vm784, %v777, %v779
        %v788 = vsel %vm784, %v783, %v777
        %s789 = scalar_lea.vmem [#allocation5], 33
        %v790 = vld [vmem:[%s789] ss:$8 sm:$0xf]
        %v792 = vlaneseq
        %v793 = vshrl.u32 %v792, 7
        %v794 = vsub.s32 0, %v793
        %v795 = vrot.slane %v790, %v794
        %v796 = vlaneseq
        %v797 = vshrl.u32 %v796, 7
        %v798 = vsub.s32 1, %v797
        %v799 = vrot.slane %v790, %v798
        %v800 = vlaneseq
        %v801 = vshrl.u32 %v800, 7
        %v802 = vsub.s32 2, %v801
        %v803 = vrot.slane %v790, %v802
        %v804 = vlaneseq
        %v805 = vshrl.u32 %v804, 7
        %v806 = vsub.s32 3, %v805
        %v807 = vrot.slane %v790, %v806
        %v812 = vmul.f32 %v788, %v795
        %v813 = vmul.f32 %v787, %v799
        %v814 = vmul.f32 %v786, %v803
        %v815 = vmul.f32 %v785, %v807
        %816 = vrot.lane.b32.xlu0 %v326, 8
        %v817 = vpop.permute.xlu0 %816
        %818 = vrot.lane.b32.xlu0 %v330, 8
        %v819 = vpop.permute.xlu0 %818
        %820 = vrot.lane.b32.xlu0 %v327, 8
        %v821 = vpop.permute.xlu0 %820
        %822 = vrot.lane.b32.xlu0 %v331, 8
        %v823 = vpop.permute.xlu0 %822
        %vm824 = vcmp.lt.s32.totalorder %v343, 8
        %v825 = vsel %vm824, %v821, %v823
        %v826 = vsel %vm824, %v819, %v821
        %v827 = vsel %vm824, %v817, %v819
        %v828 = vsel %vm824, %v823, %v817
        %s829 = scalar_lea.vmem [#allocation5], 34
        %v830 = vld [vmem:[%s829] ss:$8 sm:$0xf]
        %v832 = vlaneseq
        %v833 = vshrl.u32 %v832, 7
        %v834 = vsub.s32 0, %v833
        %v835 = vrot.slane %v830, %v834
        %v836 = vlaneseq
        %v837 = vshrl.u32 %v836, 7
        %v838 = vsub.s32 1, %v837
        %v839 = vrot.slane %v830, %v838
        %v840 = vlaneseq
        %v841 = vshrl.u32 %v840, 7
        %v842 = vsub.s32 2, %v841
        %v843 = vrot.slane %v830, %v842
        %v844 = vlaneseq
        %v845 = vshrl.u32 %v844, 7
        %v846 = vsub.s32 3, %v845
        %v847 = vrot.slane %v830, %v846
        %v852 = vmul.f32 %v828, %v835
        %v853 = vmul.f32 %v827, %v839
        %v854 = vmul.f32 %v826, %v843
        %v855 = vmul.f32 %v825, %v847
        %856 = vrot.lane.b32.xlu0 %v326, 7
        %v857 = vpop.permute.xlu0 %856
        %858 = vrot.lane.b32.xlu0 %v330, 7
        %v859 = vpop.permute.xlu0 %858
        %860 = vrot.lane.b32.xlu0 %v327, 7
        %v861 = vpop.permute.xlu0 %860
        %862 = vrot.lane.b32.xlu0 %v331, 7
        %v863 = vpop.permute.xlu0 %862
        %vm864 = vcmp.lt.s32.totalorder %v343, 7
        %v865 = vsel %vm864, %v861, %v863
        %v866 = vsel %vm864, %v859, %v861
        %v867 = vsel %vm864, %v857, %v859
        %v868 = vsel %vm864, %v863, %v857
        %s869 = scalar_lea.vmem [#allocation5], 35
        %v870 = vld [vmem:[%s869] ss:$8 sm:$0xf]
        %v872 = vlaneseq
        %v873 = vshrl.u32 %v872, 7
        %v874 = vsub.s32 0, %v873
        %v875 = vrot.slane %v870, %v874
        %v876 = vlaneseq
        %v877 = vshrl.u32 %v876, 7
        %v878 = vsub.s32 1, %v877
        %v879 = vrot.slane %v870, %v878
        %v880 = vlaneseq
        %v881 = vshrl.u32 %v880, 7
        %v882 = vsub.s32 2, %v881
        %v883 = vrot.slane %v870, %v882
        %v884 = vlaneseq
        %v885 = vshrl.u32 %v884, 7
        %v886 = vsub.s32 3, %v885
        %v887 = vrot.slane %v870, %v886
        %v892 = vmul.f32 %v868, %v875
        %v893 = vmul.f32 %v867, %v879
        %v894 = vmul.f32 %v866, %v883
        %v895 = vmul.f32 %v865, %v887
        %v900 = vrot.slane %v812, 4
        %v901 = vrot.slane %v813, 4
        %v902 = vrot.slane %v814, 4
        %v903 = vrot.slane %v815, 4
        %v912 = vrot.slane %v892, 4
        %v913 = vrot.slane %v893, 4
        %v914 = vrot.slane %v894, 4
        %v915 = vrot.slane %v895, 4
        %v920 = vsel %vm519, %v772, %v900
        %v921 = vsel %vm519, %v773, %v901
        %v922 = vsel %vm519, %v774, %v902
        %v923 = vsel %vm519, %v775, %v903
        %v924 = vsel %vm519, %v852, %v912
        %v925 = vsel %vm519, %v853, %v913
        %v926 = vsel %vm519, %v854, %v914
        %v927 = vsel %vm519, %v855, %v915
        %v928 = vpack.c.bf16 %v924, %v920
        %v929 = vpack.c.bf16 %v925, %v921
        %v930 = vpack.c.bf16 %v926, %v922
        %v931 = vpack.c.bf16 %v927, %v923
        %932 = vst [vmem:[#allocation2 + $0x40] sm:$0xff] %v928
        %933 = vst [vmem:[#allocation2 + $0x48] sm:$0xff] %v929
        %934 = vst [vmem:[#allocation2 + $0x50] sm:$0xff] %v930
        %935 = vst [vmem:[#allocation2 + $0x58] sm:$0xff] %v931
        %936 = vrot.lane.b32.xlu0 %v326, 1
        %v937 = vpop.permute.xlu0 %936
        %938 = vrot.lane.b32.xlu0 %v330, 1
        %v939 = vpop.permute.xlu0 %938
        %940 = vrot.lane.b32.xlu0 %v327, 1
        %v941 = vpop.permute.xlu0 %940
        %942 = vrot.lane.b32.xlu0 %v331, 1
        %v943 = vpop.permute.xlu0 %942
        %vm944 = vcmp.lt.s32.totalorder %v343, 1
        %v945 = vsel %vm944, %v941, %v943
        %v946 = vsel %vm944, %v939, %v941
        %v947 = vsel %vm944, %v937, %v939
        %v948 = vsel %vm944, %v943, %v937
        %s949 = scalar_lea.vmem [#allocation5], 36
        %v950 = vld [vmem:[%s949] ss:$8 sm:$0xf]
        %v952 = vlaneseq
        %v953 = vshrl.u32 %v952, 7
        %v954 = vsub.s32 0, %v953
        %v955 = vrot.slane %v950, %v954
        %v956 = vlaneseq
        %v957 = vshrl.u32 %v956, 7
        %v958 = vsub.s32 1, %v957
        %v959 = vrot.slane %v950, %v958
        %v960 = vlaneseq
        %v961 = vshrl.u32 %v960, 7
        %v962 = vsub.s32 2, %v961
        %v963 = vrot.slane %v950, %v962
        %v964 = vlaneseq
        %v965 = vshrl.u32 %v964, 7
        %v966 = vsub.s32 3, %v965
        %v967 = vrot.slane %v950, %v966
        %v972 = vmul.f32 %v948, %v955
        %v973 = vmul.f32 %v947, %v959
        %v974 = vmul.f32 %v946, %v963
        %v975 = vmul.f32 %v945, %v967
        %976 = vrot.lane.b32.xlu0 %v326, 127
        %v977 = vpop.permute.xlu0 %976
        %978 = vrot.lane.b32.xlu0 %v330, 127
        %v979 = vpop.permute.xlu0 %978
        %980 = vrot.lane.b32.xlu0 %v327, 127
        %v981 = vpop.permute.xlu0 %980
        %982 = vrot.lane.b32.xlu0 %v331, 127
        %v983 = vpop.permute.xlu0 %982
        %vm984 = vcmp.lt.s32.totalorder %v343, 127
        %v985 = vsel %vm984, %v981, %v983
        %v986 = vsel %vm984, %v979, %v981
        %v987 = vsel %vm984, %v977, %v979
        %v988 = vsel %vm984, %v983, %v977
        %s989 = scalar_lea.vmem [#allocation5], 38
        %v990 = vld [vmem:[%s989] ss:$8 sm:$0xf]
        %v992 = vlaneseq
        %v993 = vshrl.u32 %v992, 7
        %v994 = vsub.s32 0, %v993
        %v995 = vrot.slane %v990, %v994
        %v996 = vlaneseq
        %v997 = vshrl.u32 %v996, 7
        %v998 = vsub.s32 1, %v997
        %v999 = vrot.slane %v990, %v998
        %v1000 = vlaneseq
        %v1001 = vshrl.u32 %v1000, 7
        %v1002 = vsub.s32 2, %v1001
        %v1003 = vrot.slane %v990, %v1002
        %v1004 = vlaneseq
        %v1005 = vshrl.u32 %v1004, 7
        %v1006 = vsub.s32 3, %v1005
        %v1007 = vrot.slane %v990, %v1006
        %v1012 = vmul.f32 %v987, %v995
        %v1013 = vmul.f32 %v986, %v999
        %v1014 = vmul.f32 %v985, %v1003
        %v1015 = vmul.f32 %v988, %v1007
        %1016 = vrot.lane.b32.xlu0 %v326, 121
        %v1017 = vpop.permute.xlu0 %1016
        %1018 = vrot.lane.b32.xlu0 %v330, 121
        %v1019 = vpop.permute.xlu0 %1018
        %1020 = vrot.lane.b32.xlu0 %v327, 121
        %v1021 = vpop.permute.xlu0 %1020
        %1022 = vrot.lane.b32.xlu0 %v331, 121
        %v1023 = vpop.permute.xlu0 %1022
        %vm1024 = vcmp.lt.s32.totalorder %v343, 121
        %v1025 = vsel %vm1024, %v1021, %v1023
        %v1026 = vsel %vm1024, %v1019, %v1021
        %v1027 = vsel %vm1024, %v1017, %v1019
        %v1028 = vsel %vm1024, %v1023, %v1017
        %s1029 = scalar_lea.vmem [#allocation5], 39
        %v1030 = vld [vmem:[%s1029] ss:$8 sm:$0xf]
        %v1032 = vlaneseq
        %v1033 = vshrl.u32 %v1032, 7
        %v1034 = vsub.s32 0, %v1033
        %v1035 = vrot.slane %v1030, %v1034
        %v1036 = vlaneseq
        %v1037 = vshrl.u32 %v1036, 7
        %v1038 = vsub.s32 1, %v1037
        %v1039 = vrot.slane %v1030, %v1038
        %v1040 = vlaneseq
        %v1041 = vshrl.u32 %v1040, 7
        %v1042 = vsub.s32 2, %v1041
        %v1043 = vrot.slane %v1030, %v1042
        %v1044 = vlaneseq
        %v1045 = vshrl.u32 %v1044, 7
        %v1046 = vsub.s32 3, %v1045
        %v1047 = vrot.slane %v1030, %v1046
        %v1052 = vmul.f32 %v1027, %v1035
        %v1053 = vmul.f32 %v1026, %v1039
        %v1054 = vmul.f32 %v1025, %v1043
        %v1055 = vmul.f32 %v1028, %v1047
        %v1056 = vcombine.low %v326, %v326
        %v1057 = vcombine.low %v327, %v327
        %v1064 = vrot.slane %v1052, 4
        %v1065 = vrot.slane %v1053, 4
        %v1066 = vrot.slane %v1054, 4
        %v1067 = vrot.slane %v1055, 4
        %v1072 = vsel %vm519, %v972, %v1056
        %v1073 = vsel %vm519, %v973, %v326
        %v1074 = vsel %vm519, %v974, %v1057
        %v1075 = vsel %vm519, %v975, %v327
        %v1076 = vsel %vm519, %v1012, %v1064
        %v1077 = vsel %vm519, %v1013, %v1065
        %v1078 = vsel %vm519, %v1014, %v1066
        %v1079 = vsel %vm519, %v1015, %v1067
        %v1080 = vpack.c.bf16 %v1076, %v1072
        %v1081 = vpack.c.bf16 %v1077, %v1073
        %v1082 = vpack.c.bf16 %v1078, %v1074
        %v1083 = vpack.c.bf16 %v1079, %v1075
        %1084 = vst [vmem:[#allocation2 + $0x60] sm:$0xff] %v1080
        %1085 = vst [vmem:[#allocation2 + $0x68] sm:$0xff] %v1081
        %1086 = vst [vmem:[#allocation2 + $0x70] sm:$0xff] %v1082
        %1087 = vst [vmem:[#allocation2 + $0x78] sm:$0xff] %v1083
        %1088 = vrot.lane.b32.xlu0 %v326, 120
        %v1089 = vpop.permute.xlu0 %1088
        %1090 = vrot.lane.b32.xlu0 %v330, 120
        %v1091 = vpop.permute.xlu0 %1090
        %1092 = vrot.lane.b32.xlu0 %v327, 120
        %v1093 = vpop.permute.xlu0 %1092
        %1094 = vrot.lane.b32.xlu0 %v331, 120
        %v1095 = vpop.permute.xlu0 %1094
        %vm1096 = vcmp.lt.s32.totalorder %v343, 120
        %v1097 = vsel %vm1096, %v1093, %v1095
        %v1098 = vsel %vm1096, %v1091, %v1093
        %v1099 = vsel %vm1096, %v1089, %v1091
        %v1100 = vsel %vm1096, %v1095, %v1089
        %s1101 = scalar_lea.vmem [#allocation5], 64
        %v1102 = vld [vmem:[%s1101] ss:$8 sm:$0xf]
        %v1104 = vlaneseq
        %v1105 = vshrl.u32 %v1104, 7
        %v1106 = vsub.s32 0, %v1105
        %v1107 = vrot.slane %v1102, %v1106
        %v1108 = vlaneseq
        %v1109 = vshrl.u32 %v1108, 7
        %v1110 = vsub.s32 1, %v1109
        %v1111 = vrot.slane %v1102, %v1110
        %v1112 = vlaneseq
        %v1113 = vshrl.u32 %v1112, 7
        %v1114 = vsub.s32 2, %v1113
        %v1115 = vrot.slane %v1102, %v1114
        %v1116 = vlaneseq
        %v1117 = vshrl.u32 %v1116, 7
        %v1118 = vsub.s32 3, %v1117
        %v1119 = vrot.slane %v1102, %v1118
        %v1124 = vmul.f32 %v1099, %v1107
        %v1125 = vmul.f32 %v1098, %v1111
        %v1126 = vmul.f32 %v1097, %v1115
        %v1127 = vmul.f32 %v1100, %v1119
        %1128 = vrot.lane.b32.xlu0 %v326, 119
        %v1129 = vpop.permute.xlu0 %1128
        %1130 = vrot.lane.b32.xlu0 %v330, 119
        %v1131 = vpop.permute.xlu0 %1130
        %1132 = vrot.lane.b32.xlu0 %v327, 119
        %v1133 = vpop.permute.xlu0 %1132
        %1134 = vrot.lane.b32.xlu0 %v331, 119
        %v1135 = vpop.permute.xlu0 %1134
        %vm1136 = vcmp.lt.s32.totalorder %v343, 119
        %v1137 = vsel %vm1136, %v1133, %v1135
        %v1138 = vsel %vm1136, %v1131, %v1133
        %v1139 = vsel %vm1136, %v1129, %v1131
        %v1140 = vsel %vm1136, %v1135, %v1129
        %s1141 = scalar_lea.vmem [#allocation5], 65
        %v1142 = vld [vmem:[%s1141] ss:$8 sm:$0xf]
        %v1144 = vlaneseq
        %v1145 = vshrl.u32 %v1144, 7
        %v1146 = vsub.s32 0, %v1145
        %v1147 = vrot.slane %v1142, %v1146
        %v1148 = vlaneseq
        %v1149 = vshrl.u32 %v1148, 7
        %v1150 = vsub.s32 1, %v1149
        %v1151 = vrot.slane %v1142, %v1150
        %v1152 = vlaneseq
        %v1153 = vshrl.u32 %v1152, 7
        %v1154 = vsub.s32 2, %v1153
        %v1155 = vrot.slane %v1142, %v1154
        %v1156 = vlaneseq
        %v1157 = vshrl.u32 %v1156, 7
        %v1158 = vsub.s32 3, %v1157
        %v1159 = vrot.slane %v1142, %v1158
        %v1164 = vmul.f32 %v1139, %v1147
        %v1165 = vmul.f32 %v1138, %v1151
        %v1166 = vmul.f32 %v1137, %v1155
        %v1167 = vmul.f32 %v1140, %v1159
        %s1168 = scalar_lea.vmem [#allocation5], 66
        %v1169 = vld [vmem:[%s1168] ss:$8 sm:$0xf]
        %v1171 = vlaneseq
        %v1172 = vshrl.u32 %v1171, 7
        %v1173 = vsub.s32 0, %v1172
        %v1174 = vrot.slane %v1169, %v1173
        %v1175 = vlaneseq
        %v1176 = vshrl.u32 %v1175, 7
        %v1177 = vsub.s32 1, %v1176
        %v1178 = vrot.slane %v1169, %v1177
        %v1179 = vlaneseq
        %v1180 = vshrl.u32 %v1179, 7
        %v1181 = vsub.s32 2, %v1180
        %v1182 = vrot.slane %v1169, %v1181
        %v1183 = vlaneseq
        %v1184 = vshrl.u32 %v1183, 7
        %v1185 = vsub.s32 3, %v1184
        %v1186 = vrot.slane %v1169, %v1185
        %v1191 = vmul.f32 %v347, %v1174
        %v1192 = vmul.f32 %v346, %v1178
        %v1193 = vmul.f32 %v345, %v1182
        %v1194 = vmul.f32 %v348, %v1186
        %s1195 = scalar_lea.vmem [#allocation5], 67
        %v1196 = vld [vmem:[%s1195] ss:$8 sm:$0xf]
        %v1198 = vlaneseq
        %v1199 = vshrl.u32 %v1198, 7
        %v1200 = vsub.s32 0, %v1199
        %v1201 = vrot.slane %v1196, %v1200
        %v1202 = vlaneseq
        %v1203 = vshrl.u32 %v1202, 7
        %v1204 = vsub.s32 1, %v1203
        %v1205 = vrot.slane %v1196, %v1204
        %v1206 = vlaneseq
        %v1207 = vshrl.u32 %v1206, 7
        %v1208 = vsub.s32 2, %v1207
        %v1209 = vrot.slane %v1196, %v1208
        %v1210 = vlaneseq
        %v1211 = vshrl.u32 %v1210, 7
        %v1212 = vsub.s32 3, %v1211
        %v1213 = vrot.slane %v1196, %v1212
        %v1218 = vmul.f32 %v386, %v1201
        %v1219 = vmul.f32 %v385, %v1205
        %v1220 = vmul.f32 %v384, %v1209
        %v1221 = vmul.f32 %v387, %v1213
        %v1226 = vrot.slane %v1164, 4
        %v1227 = vrot.slane %v1165, 4
        %v1228 = vrot.slane %v1166, 4
        %v1229 = vrot.slane %v1167, 4
        %v1238 = vrot.slane %v1218, 4
        %v1239 = vrot.slane %v1219, 4
        %v1240 = vrot.slane %v1220, 4
        %v1241 = vrot.slane %v1221, 4
        %v1246 = vsel %vm519, %v1124, %v1226
        %v1247 = vsel %vm519, %v1125, %v1227
        %v1248 = vsel %vm519, %v1126, %v1228
        %v1249 = vsel %vm519, %v1127, %v1229
        %v1250 = vsel %vm519, %v1191, %v1238
        %v1251 = vsel %vm519, %v1192, %v1239
        %v1252 = vsel %vm519, %v1193, %v1240
        %v1253 = vsel %vm519, %v1194, %v1241
        %v1254 = vpack.c.bf16 %v1250, %v1246
        %v1255 = vpack.c.bf16 %v1251, %v1247
        %v1256 = vpack.c.bf16 %v1252, %v1248
        %v1257 = vpack.c.bf16 %v1253, %v1249
        %1258 = vst [vmem:[#allocation2 + $0x80] sm:$0xff] %v1254
        %1259 = vst [vmem:[#allocation2 + $0x88] sm:$0xff] %v1255
        %1260 = vst [vmem:[#allocation2 + $0x90] sm:$0xff] %v1256
        %1261 = vst [vmem:[#allocation2 + $0x98] sm:$0xff] %v1257
        %s1262 = scalar_lea.vmem [#allocation5], 68
        %v1263 = vld [vmem:[%s1262] ss:$8 sm:$0xf]
        %v1265 = vlaneseq
        %v1266 = vshrl.u32 %v1265, 7
        %v1267 = vsub.s32 0, %v1266
        %v1268 = vrot.slane %v1263, %v1267
        %v1269 = vlaneseq
        %v1270 = vshrl.u32 %v1269, 7
        %v1271 = vsub.s32 1, %v1270
        %v1272 = vrot.slane %v1263, %v1271
        %v1273 = vlaneseq
        %v1274 = vshrl.u32 %v1273, 7
        %v1275 = vsub.s32 2, %v1274
        %v1276 = vrot.slane %v1263, %v1275
        %v1277 = vlaneseq
        %v1278 = vshrl.u32 %v1277, 7
        %v1279 = vsub.s32 3, %v1278
        %v1280 = vrot.slane %v1263, %v1279
        %v1285 = vmul.f32 %v426, %v1268
        %v1286 = vmul.f32 %v425, %v1272
        %v1287 = vmul.f32 %v424, %v1276
        %v1288 = vmul.f32 %v427, %v1280
        %s1289 = scalar_lea.vmem [#allocation5], 69
        %v1290 = vld [vmem:[%s1289] ss:$8 sm:$0xf]
        %v1292 = vlaneseq
        %v1293 = vshrl.u32 %v1292, 7
        %v1294 = vsub.s32 0, %v1293
        %v1295 = vrot.slane %v1290, %v1294
        %v1296 = vlaneseq
        %v1297 = vshrl.u32 %v1296, 7
        %v1298 = vsub.s32 1, %v1297
        %v1299 = vrot.slane %v1290, %v1298
        %v1300 = vlaneseq
        %v1301 = vshrl.u32 %v1300, 7
        %v1302 = vsub.s32 2, %v1301
        %v1303 = vrot.slane %v1290, %v1302
        %v1304 = vlaneseq
        %v1305 = vshrl.u32 %v1304, 7
        %v1306 = vsub.s32 3, %v1305
        %v1307 = vrot.slane %v1290, %v1306
        %v1312 = vmul.f32 %v466, %v1295
        %v1313 = vmul.f32 %v465, %v1299
        %v1314 = vmul.f32 %v464, %v1303
        %v1315 = vmul.f32 %v467, %v1307
        %s1316 = scalar_lea.vmem [#allocation5], 70
        %v1317 = vld [vmem:[%s1316] ss:$8 sm:$0xf]
        %v1319 = vlaneseq
        %v1320 = vshrl.u32 %v1319, 7
        %v1321 = vsub.s32 0, %v1320
        %v1322 = vrot.slane %v1317, %v1321
        %v1323 = vlaneseq
        %v1324 = vshrl.u32 %v1323, 7
        %v1325 = vsub.s32 1, %v1324
        %v1326 = vrot.slane %v1317, %v1325
        %v1327 = vlaneseq
        %v1328 = vshrl.u32 %v1327, 7
        %v1329 = vsub.s32 2, %v1328
        %v1330 = vrot.slane %v1317, %v1329
        %v1331 = vlaneseq
        %v1332 = vshrl.u32 %v1331, 7
        %v1333 = vsub.s32 3, %v1332
        %v1334 = vrot.slane %v1317, %v1333
        %v1339 = vmul.f32 %v547, %v1322
        %v1340 = vmul.f32 %v546, %v1326
        %v1341 = vmul.f32 %v545, %v1330
        %v1342 = vmul.f32 %v548, %v1334
        %s1343 = scalar_lea.vmem [#allocation5], 71
        %v1344 = vld [vmem:[%s1343] ss:$8 sm:$0xf]
        %v1346 = vlaneseq
        %v1347 = vshrl.u32 %v1346, 7
        %v1348 = vsub.s32 0, %v1347
        %v1349 = vrot.slane %v1344, %v1348
        %v1350 = vlaneseq
        %v1351 = vshrl.u32 %v1350, 7
        %v1352 = vsub.s32 1, %v1351
        %v1353 = vrot.slane %v1344, %v1352
        %v1354 = vlaneseq
        %v1355 = vshrl.u32 %v1354, 7
        %v1356 = vsub.s32 2, %v1355
        %v1357 = vrot.slane %v1344, %v1356
        %v1358 = vlaneseq
        %v1359 = vshrl.u32 %v1358, 7
        %v1360 = vsub.s32 3, %v1359
        %v1361 = vrot.slane %v1344, %v1360
        %v1366 = vmul.f32 %v587, %v1349
        %v1367 = vmul.f32 %v586, %v1353
        %v1368 = vmul.f32 %v585, %v1357
        %v1369 = vmul.f32 %v588, %v1361
        %v1374 = vrot.slane %v1312, 4
        %v1375 = vrot.slane %v1313, 4
        %v1376 = vrot.slane %v1314, 4
        %v1377 = vrot.slane %v1315, 4
        %v1386 = vrot.slane %v1366, 4
        %v1387 = vrot.slane %v1367, 4
        %v1388 = vrot.slane %v1368, 4
        %v1389 = vrot.slane %v1369, 4
        %v1394 = vsel %vm519, %v1285, %v1374
        %v1395 = vsel %vm519, %v1286, %v1375
        %v1396 = vsel %vm519, %v1287, %v1376
        %v1397 = vsel %vm519, %v1288, %v1377
        %v1398 = vsel %vm519, %v1339, %v1386
        %v1399 = vsel %vm519, %v1340, %v1387
        %v1400 = vsel %vm519, %v1341, %v1388
        %v1401 = vsel %vm519, %v1342, %v1389
        %v1402 = vpack.c.bf16 %v1398, %v1394
        %v1403 = vpack.c.bf16 %v1399, %v1395
        %v1404 = vpack.c.bf16 %v1400, %v1396
        %v1405 = vpack.c.bf16 %v1401, %v1397
        %1406 = vst [vmem:[#allocation2 + $0xa0] sm:$0xff] %v1402
        %1407 = vst [vmem:[#allocation2 + $0xa8] sm:$0xff] %v1403
        %1408 = vst [vmem:[#allocation2 + $0xb0] sm:$0xff] %v1404
        %1409 = vst [vmem:[#allocation2 + $0xb8] sm:$0xff] %v1405
        %s1410 = scalar_lea.vmem [#allocation5], 96
        %v1411 = vld [vmem:[%s1410] ss:$8 sm:$0xf]
        %v1413 = vlaneseq
        %v1414 = vshrl.u32 %v1413, 7
        %v1415 = vsub.s32 0, %v1414
        %v1416 = vrot.slane %v1411, %v1415
        %v1417 = vlaneseq
        %v1418 = vshrl.u32 %v1417, 7
        %v1419 = vsub.s32 1, %v1418
        %v1420 = vrot.slane %v1411, %v1419
        %v1421 = vlaneseq
        %v1422 = vshrl.u32 %v1421, 7
        %v1423 = vsub.s32 2, %v1422
        %v1424 = vrot.slane %v1411, %v1423
        %v1425 = vlaneseq
        %v1426 = vshrl.u32 %v1425, 7
        %v1427 = vsub.s32 3, %v1426
        %v1428 = vrot.slane %v1411, %v1427
        %v1433 = vmul.f32 %v627, %v1416
        %v1434 = vmul.f32 %v626, %v1420
        %v1435 = vmul.f32 %v625, %v1424
        %v1436 = vmul.f32 %v628, %v1428
        %s1437 = scalar_lea.vmem [#allocation5], 97
        %v1438 = vld [vmem:[%s1437] ss:$8 sm:$0xf]
        %v1440 = vlaneseq
        %v1441 = vshrl.u32 %v1440, 7
        %v1442 = vsub.s32 0, %v1441
        %v1443 = vrot.slane %v1438, %v1442
        %v1444 = vlaneseq
        %v1445 = vshrl.u32 %v1444, 7
        %v1446 = vsub.s32 1, %v1445
        %v1447 = vrot.slane %v1438, %v1446
        %v1448 = vlaneseq
        %v1449 = vshrl.u32 %v1448, 7
        %v1450 = vsub.s32 2, %v1449
        %v1451 = vrot.slane %v1438, %v1450
        %v1452 = vlaneseq
        %v1453 = vshrl.u32 %v1452, 7
        %v1454 = vsub.s32 3, %v1453
        %v1455 = vrot.slane %v1438, %v1454
        %v1460 = vmul.f32 %v667, %v1443
        %v1461 = vmul.f32 %v666, %v1447
        %v1462 = vmul.f32 %v665, %v1451
        %v1463 = vmul.f32 %v668, %v1455
        %s1464 = scalar_lea.vmem [#allocation5], 98
        %v1465 = vld [vmem:[%s1464] ss:$8 sm:$0xf]
        %v1467 = vlaneseq
        %v1468 = vshrl.u32 %v1467, 7
        %v1469 = vsub.s32 0, %v1468
        %v1470 = vrot.slane %v1465, %v1469
        %v1471 = vlaneseq
        %v1472 = vshrl.u32 %v1471, 7
        %v1473 = vsub.s32 1, %v1472
        %v1474 = vrot.slane %v1465, %v1473
        %v1475 = vlaneseq
        %v1476 = vshrl.u32 %v1475, 7
        %v1477 = vsub.s32 2, %v1476
        %v1478 = vrot.slane %v1465, %v1477
        %v1479 = vlaneseq
        %v1480 = vshrl.u32 %v1479, 7
        %v1481 = vsub.s32 3, %v1480
        %v1482 = vrot.slane %v1465, %v1481
        %v1487 = vmul.f32 %v747, %v1470
        %v1488 = vmul.f32 %v746, %v1474
        %v1489 = vmul.f32 %v745, %v1478
        %v1490 = vmul.f32 %v748, %v1482
        %v1495 = vrot.slane %v1460, 4
        %v1496 = vrot.slane %v1461, 4
        %v1497 = vrot.slane %v1462, 4
        %v1498 = vrot.slane %v1463, 4
        %v1503 = vsel %vm519, %v1433, %v1495
        %v1504 = vsel %vm519, %v1434, %v1496
        %v1505 = vsel %vm519, %v1435, %v1497
        %v1506 = vsel %vm519, %v1436, %v1498
        %v1507 = vsel %vm519, %v1487, 0.0
        %v1508 = vsel %vm519, %v1488, 0.0
        %v1509 = vsel %vm519, %v1489, 0.0
        %v1510 = vsel %vm519, %v1490, 0.0
        %v1511 = vpack.c.bf16 %v1507, %v1503
        %v1512 = vpack.c.bf16 %v1508, %v1504
        %v1513 = vpack.c.bf16 %v1509, %v1505
        %v1514 = vpack.c.bf16 %v1510, %v1506
        %1515 = vst [vmem:[#allocation2 + $0xc0] sm:$0xff] %v1511
        %1516 = vst [vmem:[#allocation2 + $0xc8] sm:$0xff] %v1512
        %1517 = vst [vmem:[#allocation2 + $0xd0] sm:$0xff] %v1513
        %1518 = vst [vmem:[#allocation2 + $0xd8] sm:$0xff] %v1514
        %v1519 = vld [vmem:[%s4] sm:$0xf]
        %v1520 = vld [vmem:[%s4 + $0x4] sm:$0x3]
        %v1521 = vld [vmem:[#allocation2] sm:$0xff]
        %v1522 = vld [vmem:[#allocation2 + $0x8] sm:$0xff]
        %v1523 = vld [vmem:[#allocation2 + $0x10] sm:$0xff]
        %v1524 = vld [vmem:[#allocation2 + $0x18] sm:$0xff]
        %v1525 = vld [vmem:[#allocation2 + $0x20] sm:$0xff]
        %v1526 = vld [vmem:[#allocation2 + $0x28] sm:$0xff]
        %v1527 = vld [vmem:[#allocation2 + $0x30] sm:$0xff]
        %v1528 = vld [vmem:[#allocation2 + $0x38] sm:$0xff]
        %v1529 = vld [vmem:[#allocation2 + $0x40] sm:$0xff]
        %v1530 = vld [vmem:[#allocation2 + $0x48] sm:$0xff]
        %v1531 = vld [vmem:[#allocation2 + $0x50] sm:$0xff]
        %v1532 = vld [vmem:[#allocation2 + $0x58] sm:$0xff]
        %v1533 = vld [vmem:[#allocation2 + $0x60] sm:$0xff]
        %v1534 = vld [vmem:[#allocation2 + $0x68] sm:$0xff]
        %v1535 = vld [vmem:[#allocation2 + $0x70] sm:$0xff]
        %v1536 = vld [vmem:[#allocation2 + $0x78] sm:$0xff]
        %v1537 = vld [vmem:[#allocation2 + $0x80] sm:$0xff]
        %v1538 = vld [vmem:[#allocation2 + $0x88] sm:$0xff]
        %v1539 = vld [vmem:[#allocation2 + $0x90] sm:$0xff]
        %v1540 = vld [vmem:[#allocation2 + $0x98] sm:$0xff]
        %v1541 = vld [vmem:[#allocation2 + $0xa0] sm:$0xff]
        %v1542 = vld [vmem:[#allocation2 + $0xa8] sm:$0xff]
        %v1543 = vld [vmem:[#allocation2 + $0xb0] sm:$0xff]
        %v1544 = vld [vmem:[#allocation2 + $0xb8] sm:$0xff]
        %v1545 = vld [vmem:[#allocation2 + $0xc0] sm:$0xff]
        %v1546 = vld [vmem:[#allocation2 + $0xc8] sm:$0xff]
        %v1547 = vld [vmem:[#allocation2 + $0xd0] sm:$0xff]
        %v1548 = vld [vmem:[#allocation2 + $0xd8] sm:$0xff]
        %v1549 = vld [vmem:[%s5] sm:$0xff]
        %v1550 = vld [vmem:[%s5 + $0x8] sm:$0xf]
        %1552 = vset.pattern.permute.xlu0 0
        %1553 = vperm.xlu0 %1552, %v1549
        %v1554 = vpop.permute.xlu0 %1553
        %1557 = vset.pattern.permute.xlu0 0
        %1558 = vperm.xlu0 %1557, %v1550
        %v1559 = vpop.permute.xlu0 %1558
        %v1563 = vunpack.c.l.b16 %v1519
        %v1564 = vunpack.c.l.b16 %v1520
        %v1565 = vpack.c.b16 %v1564, %v1563
        %vm1566 = vcmask 916480
        %v1568 = vsel %vm1566, %v1565, 0
        %1570 = vmatprep.subr.bf16.mxu0 %v1522
        %1571 = vmatpush1.bf16.msra.mxu0 %v1521
        %1572 = vmatprep.subr.bf16.mxu0 %v1526
        %1573 = vmatpush1.bf16.msra.mxu0 %v1525
        %1574 = vmatprep.subr.bf16.mxu0 %v1530
        %1575 = vmatpush1.bf16.msra.mxu0 %v1529
        %1576 = vmatprep.subr.bf16.mxu0 %v1534
        %1577 = vmatpush1.bf16.msra.mxu0 %v1533
        %1578 = vmatprep.subr.bf16.mxu0 %v1538
        %1579 = vmatpush1.bf16.msra.mxu0 %v1537
        %1580 = vmatprep.subr.bf16.mxu0 %v1542
        %1581 = vmatpush1.bf16.msra.mxu0 %v1541
        %1582 = vmatprep.subr.bf16.mxu0 %v1546
        %1583 = vmatpush1.bf16.msra.mxu0 %v1545
        %1584 = vmatprep.subr.bf16.mxu0 0
        %1585 = vmatpush1.bf16.msra.mxu0 0
        %1586 = vmatprep.subr.bf16.mxu0 0
        %1587 = vmatpush1.bf16.msra.mxu0 0
        %1588 = vmatprep.subr.bf16.mxu0 0
        %1589 = vmatpush1.bf16.msra.mxu0 0
        %1590 = vmatprep.subr.bf16.mxu0 0
        %1591 = vmatpush1.bf16.msra.mxu0 0
        %1592 = vmatprep.subr.bf16.mxu0 0
        %1593 = vmatpush1.bf16.msra.mxu0 0
        %1594 = vmatprep.subr.bf16.mxu0 0
        %1595 = vmatpush1.bf16.msra.mxu0 0
        %1596 = vmatprep.subr.bf16.mxu0 0
        %1597 = vmatpush1.bf16.msra.mxu0 0
        %1598 = vmatprep.subr.bf16.mxu0 0
        %1599 = vmatpush1.bf16.msra.mxu0 0
        %1600 = vmatprep.subr.bf16.mxu0 0
        %1601 = vmatpush1.bf16.msra.mxu0 0
        %1602 = vmatprep.mubr.bf16.mxu0 0
        %1603 = vmatmul.mubr.bf16.gmra.mrb[0].mxu0 %v1568
        %v1604 = vpop.f32.mrb[0].mxu0
        %v1605 = vadd.f32 %v1554, %v1604
        %v1606 = vpop.f32.mrb[0].mxu0
        %v1607 = vadd.f32 %v1554, %v1606
        %v1608 = vpop.f32.mrb[0].mxu0
        %v1609 = vadd.f32 %v1559, %v1608
        %v1610 = vpop.f32.mrb[0].mxu0
        %v1611 = vadd.f32 %v1559, %v1610
        %1612 = vdwg.mxu0
        %1613 = vmatprep.subr.bf16.mxu0 %v1524
        %1614 = vmatpush1.bf16.msra.mxu0 %v1523
        %1615 = vmatprep.subr.bf16.mxu0 %v1528
        %1616 = vmatpush1.bf16.msra.mxu0 %v1527
        %1617 = vmatprep.subr.bf16.mxu0 %v1532
        %1618 = vmatpush1.bf16.msra.mxu0 %v1531
        %1619 = vmatprep.subr.bf16.mxu0 %v1536
        %1620 = vmatpush1.bf16.msra.mxu0 %v1535
        %1621 = vmatprep.subr.bf16.mxu0 %v1540
        %1622 = vmatpush1.bf16.msra.mxu0 %v1539
        %1623 = vmatprep.subr.bf16.mxu0 %v1544
        %1624 = vmatpush1.bf16.msra.mxu0 %v1543
        %1625 = vmatprep.subr.bf16.mxu0 %v1548
        %1626 = vmatpush1.bf16.msra.mxu0 %v1547
        %1627 = vmatprep.subr.bf16.mxu0 0
        %1628 = vmatpush1.bf16.msra.mxu0 0
        %1629 = vmatprep.subr.bf16.mxu0 0
        %1630 = vmatpush1.bf16.msra.mxu0 0
        %1631 = vmatprep.subr.bf16.mxu0 0
        %1632 = vmatpush1.bf16.msra.mxu0 0
        %1633 = vmatprep.subr.bf16.mxu0 0
        %1634 = vmatpush1.bf16.msra.mxu0 0
        %1635 = vmatprep.subr.bf16.mxu0 0
        %1636 = vmatpush1.bf16.msra.mxu0 0
        %1637 = vmatprep.subr.bf16.mxu0 0
        %1638 = vmatpush1.bf16.msra.mxu0 0
        %1639 = vmatprep.subr.bf16.mxu0 0
        %1640 = vmatpush1.bf16.msra.mxu0 0
        %1641 = vmatprep.subr.bf16.mxu0 0
        %1642 = vmatpush1.bf16.msra.mxu0 0
        %1643 = vmatprep.subr.bf16.mxu0 0
        %1644 = vmatpush1.bf16.msra.mxu0 0
        %1645 = vmatprep.mubr.bf16.mxu0 0
        %1646 = vmatmul.mubr.bf16.gmra.mrb[0].mxu0 %v1568
        %v1647 = vpop.f32.mrb[0].mxu0
        %v1648 = vadd.f32 %v1554, %v1647
        %v1649 = vpop.f32.mrb[0].mxu0
        %v1650 = vadd.f32 %v1554, %v1649
        %v1651 = vpop.f32.mrb[0].mxu0
        %v1652 = vadd.f32 %v1559, %v1651
        %v1653 = vpop.f32.mrb[0].mxu0
        %v1654 = vadd.f32 %v1559, %v1653
        %1655 = vdwg.mxu0
        %1656 = vst [vmem:[%s284] sm:$0xff] %v1605
        %1657 = vst [vmem:[%s284 + $0x8] sm:$0xff] %v1607
        %1658 = vst [vmem:[%s284 + $0x10] sm:$0xff] %v1648
        %1659 = vst [vmem:[%s284 + $0x18] sm:$0xff] %v1650
        %1660 = vst [vmem:[%s284 + $0x20] sm:$0xf] %v1609
        %1661 = vst [vmem:[%s284 + $0x28] sm:$0xf] %v1611
        %1662 = vst [vmem:[%s284 + $0x30] sm:$0xf] %v1652
        %1663 = vst [vmem:[%s284 + $0x38] sm:$0xf] %v1654
        %p1664 = scmp.lt.s32.totalorder %s21, 1
        %s1665 = scalar_select %p1664, %s21, 1
        %s1666 = smul.addr %s1665, 8
        %s1667 = smul.addr %s1666, 8
        %s1668 = scalar_lea.vmem %s6, %s1667
        // Predicated region
        $region53: #{tpu_custom_call.1} parent=43 // pred_check
          %p1669 = pneg %p170
        $region54: #{tpu_custom_call.1} parent=43 // pred_check_branch
          %1671 = sbr.rel (%p1669) target = $region56
        $region55: #{tpu_custom_call.1} parent=43 // pred_region
          _
        $region56: #{tpu_custom_call.1} parent=43 // pred_fallthru
          _
      $region44: #{tpu_custom_call.1} parent=5 // pred_fallthru
        _
      %p1672 = scmp.le.s32.totalorder 2, %s16
      // Predicated region
      $region57: #{tpu_custom_call.1} parent=5 // pred_check
        %p1673 = pneg %p1672
      $region58: #{tpu_custom_call.1} parent=5 // pred_check_branch
        %1675 = sbr.rel (%p1673) target = $region60
      $region59: #{tpu_custom_call.1} parent=5 // pred_region
        %s1676 = ssub.s32 %s16, 2
        // Predicated region
        $region61: #{tpu_custom_call.1} parent=59 // pred_check
          %p1677 = pneg %p176
        $region62: #{tpu_custom_call.1} parent=59 // pred_check_branch
          %1679 = sbr.rel (%p1677) target = $region64
        $region63: #{tpu_custom_call.1} parent=59 // pred_region
          %p1680 = scmp.lt.s32.totalorder %s22, 1
          %s1681 = scalar_select %p1680, %s22, 1
          %s1682 = smul.addr %s1681, 8
          %s1683 = smul.addr %s1682, 8
          %s1684 = scalar_lea.vmem %s6, %s1683
        $region64: #{tpu_custom_call.1} parent=59 // pred_fallthru
          _
      $region60: #{tpu_custom_call.1} parent=5 // pred_fallthru
        _
    $region6: #{tpu_custom_call.1} parent=1 // loop_footer
      %s20 = sadd.s32 1, %s16
    $region7: #{tpu_custom_call.1} parent=1 // loop_footer_branch
      %15 = sbr.rel target = $region3
    $region8: #{tpu_custom_call.1} parent=1 // loop_exit
      _
    %1685 = vsyncpa [#allocation4], 1
    %s1686 = scalar_lea.sflag [#allocation4], 1
    %1687 = vsyncpa %s1686, 1
    %1688 = vsyncpa [#allocation6], 1

</llo_original>
